<compile_context>
chip_gen: v7x
topology: tpu7x:2x2x1
jax: 0.10.0
libtpu: 0.0.40
codegen_flags: <defaults>
</compile_context>

<pallas_src>
import jax
import jax.numpy as jnp
import numpy as np
from jax.experimental import pallas as pl
from jax.experimental.pallas import tpu as pltpu


def _cdiv(a, b):
    return -(-a // b)


def _round_up(a, b):
    return _cdiv(a, b) * b


# ----------------------------------------------------------------------------
# Pallas kernel: fused local-branch MS_CAM + AFF combine for one (n, p) tile
# ----------------------------------------------------------------------------
def aff_kernel(x_ref, y_ref, g2_ref,
               w21_ref, b21_ref, w22_ref, b22_ref,
               z_ref):
    # native-dtype tiles from HBM; f32 for the epilogue math
    Xf = x_ref[0].astype(jnp.float32)          # (T, C)
    Yf = y_ref[0].astype(jnp.float32)          # (T, C)
    xf = Xf + Yf                               # MS_CAM input, f32

    # ---- local branch: two 1x1 convs == MXU matmuls (bf16 operands, f32 acc).
    # BN scales are pre-folded into w21/w22; only the shift adds remain.
    l1 = jnp.dot(xf.astype(jnp.bfloat16), w21_ref[...],
                 preferred_element_type=jnp.float32)           # (T, I)
    l1 = jnp.maximum(l1 + b21_ref[...], 0.0)                   # bn21 shift + relu
    l2 = jnp.dot(l1.astype(jnp.bfloat16), w22_ref[...],
                 preferred_element_type=jnp.float32)           # (T, C)
    l2 = l2 + b22_ref[...]                                     # bn22 shift

    # ---- attention mask + fusion (global branch g2 precomputed per batch) ----
    m = jax.nn.sigmoid(l2 + g2_ref[0])         # (T, C), broadcast (1, C)
    M = m * xf                                 # MS_CAM output M = sigmoid(.)*(X+Y)
    # Z = M*X + (1-M)*Y  ==  Y + M*(X - Y)   (one fewer full-tile multiply)
    z_ref[0] = (Yf + M * (Xf - Yf)).astype(z_ref.dtype)


# ----------------------------------------------------------------------------
# Parameter setup (deterministic, eval-mode BN expressed as scale/shift)
# ----------------------------------------------------------------------------
def init_params(key, C, r, eps=1e-5):
    I = max(C // r, 1)
    ks = jax.random.split(key, 16)

    def conv_w(k, out_c, in_c):
        # kaiming-ish deterministic init for a 1x1 conv, stored (out, in)
        return jax.random.normal(k, (out_c, in_c), jnp.float32) / np.sqrt(in_c)

    def bn(kg, kb, km, dim):
        gamma = 1.0 + 0.1 * jax.random.normal(kg, (dim,), jnp.float32)
        beta = 0.1 * jax.random.normal(kb, (dim,), jnp.float32)
        mean = 0.1 * jax.random.normal(km, (dim,), jnp.float32)
        var = jnp.ones((dim,), jnp.float32)
        scale = gamma / jnp.sqrt(var + eps)
        shift = beta - mean * scale
        return scale, shift

    W11 = conv_w(ks[0], I, C)
    W12 = conv_w(ks[1], C, I)
    W21 = conv_w(ks[2], I, C)
    W22 = conv_w(ks[3], C, I)
    s11, b11 = bn(ks[4], ks[5], ks[6], I)
    s12, b12 = bn(ks[7], ks[8], ks[9], C)
    s21, b21 = bn(ks[10], ks[11], ks[12], I)
    s22, b22 = bn(ks[13], ks[14], ks[15], C)

    # NOTE: do NOT store python ints (e.g. interdim) in this dict — under jit
    # they become tracers and can no longer be used as static shape arguments.
    return dict(W11=W11, s11=s11, b11=b11, W12=W12, s12=s12, b12=b12,
                W21=W21, s21=s21, b21=b21, W22=W22, s22=s22, b22=b22)


# ----------------------------------------------------------------------------
# Tile selection from a VMEM budget (double-buffered blocks + f32 body temps)
# ----------------------------------------------------------------------------
def _derive_tile_p(P, C, I, *, in_bytes, out_bytes, budget_bytes,
                   N=1, min_grid_steps=8):
    # BlockSpec double-buffers each block: X, Y, out.
    per_row = 2 * (2 * in_bytes * C + out_bytes * C)
    # f32 intermediates in the body (Xf, Yf, xf, l2, m/M, Z) + l1 (T, I)
    per_row += 6 * 4 * C + 2 * 4 * max(I, 128)
    t = max(int(budget_bytes // per_row), 8)
    t = min(t, 4096, _round_up(P, 8))
    # keep enough grid steps so both v7x TensorCores get pipelined work
    while N * _cdiv(P, t) < min_grid_steps and t > 256:
        t //= 2
    return max(8, (t // 8) * 8)


# ----------------------------------------------------------------------------
# Wrapper: NHWC in / NHWC out (no layout transposes), Pallas kernel on (N,P,C)
# ----------------------------------------------------------------------------
def aff_forward(X_nhwc, Y_nhwc, params, *, tile_p=None,
                out_dtype=jnp.bfloat16, vmem_limit_bytes=None):
    # NOTE: NHWC at the boundary avoids full HBM transpose passes. Callers
    # holding NCHW should transpose once outside.
    N, H, W, C = X_nhwc.shape
    P = H * W
    I = params["W21"].shape[0]          # static hidden dim (from weight shape)
    LANE = 128

    # ---- fold eval-mode BN scales into the 1x1-conv weights ----
    # stored W: (out, in); folded+transposed to (in, out) for (P,C)@(C,I)
    w11 = (params["W11"] * params["s11"][:, None]).T                        # (C, I) f32
    w12 = (params["W12"] * params["s12"][:, None]).T                        # (I, C) f32
    w21 = ((params["W21"] * params["s21"][:, None]).T).astype(jnp.bfloat16)  # (C, I)
    w22 = ((params["W22"] * params["s22"][:, None]).T).astype(jnp.bfloat16)  # (I, C)
    b21 = params["b21"].reshape(1, I).astype(jnp.float32)
    b22 = params["b22"].reshape(1, C).astype(jnp.float32)

    # ---- global branch hoisted out of the hot loop (tiny: (N, C), f32) ----
    gmean = (jnp.mean(X_nhwc.astype(jnp.float32), axis=(1, 2)) +
             jnp.mean(Y_nhwc.astype(jnp.float32), axis=(1, 2)))             # (N, C)
    g1 = jnp.maximum(gmean @ w11 + params["b11"][None, :], 0.0)             # (N, I)
    g2 = (g1 @ w12 + params["b12"][None, :]).astype(jnp.float32)            # (N, C)

    # ---- free (H,W) -> P flatten, inputs stay in their native dtype ----
    x3 = X_nhwc.reshape(N, P, C)
    y3 = Y_nhwc.reshape(N, P, C)

    # ---- pad channels to a multiple of 128 for lane-dense stores ----
    Cp = _round_up(C, LANE)
    if Cp != C:
        cpad = Cp - C
        x3 = jnp.pad(x3, ((0, 0), (0, 0), (0, cpad)))
        y3 = jnp.pad(y3, ((0, 0), (0, 0), (0, cpad)))
        w21 = jnp.pad(w21, ((0, cpad), (0, 0)))     # zero rows: math unchanged
        w22 = jnp.pad(w22, ((0, 0), (0, cpad)))     # zero cols: pad outputs = 0
        b22 = jnp.pad(b22, ((0, 0), (0, cpad)))
        g2 = jnp.pad(g2, ((0, 0), (0, cpad)))
    g2 = g2.reshape(N, 1, Cp)

    # ---- per-generation VMEM limit + VMEM-budget-derived tile ----
    if vmem_limit_bytes is None:
        try:
            cap = pltpu.get_tpu_info().vmem_capacity_bytes   # 128 MiB v5e/v6e, 64 MiB v7x
        except Exception:
            cap = 64 * 1024 * 1024
        vmem_limit_bytes = min(int(0.75 * cap), 96 * 1024 * 1024)
    if tile_p is None:
        tile_p = _derive_tile_p(
            P, Cp, I,
            in_bytes=jnp.dtype(X_nhwc.dtype).itemsize,
            out_bytes=jnp.dtype(out_dtype).itemsize,
            budget_bytes=vmem_limit_bytes // 2,   # headroom for compiler temps
            N=N)
    tile_p = max(8, (min(int(tile_p), _round_up(P, 8)) // 8) * 8)

    # ---- pad P to a multiple of tile_p (cdiv grid with zero tail) ----
    Pp = _round_up(P, tile_p)
    if Pp != P:
        ppad = Pp - P
        x3 = jnp.pad(x3, ((0, 0), (0, ppad), (0, 0)))
        y3 = jnp.pad(y3, ((0, 0), (0, ppad), (0, 0)))

    grid = (N, Pp // tile_p)

    in_specs = [
        pl.BlockSpec((1, tile_p, Cp), lambda n, p: (n, p, 0)),   # X (native dtype)
        pl.BlockSpec((1, tile_p, Cp), lambda n, p: (n, p, 0)),   # Y (native dtype)
        pl.BlockSpec((1, 1, Cp),      lambda n, p: (n, 0, 0)),   # g2 (f32)
        pl.BlockSpec((Cp, I),         lambda n, p: (0, 0)),      # W21*s21 (bf16)
        pl.BlockSpec((1, I),          lambda n, p: (0, 0)),      # b21
        pl.BlockSpec((I, Cp),         lambda n, p: (0, 0)),      # W22*s22 (bf16)
        pl.BlockSpec((1, Cp),         lambda n, p: (0, 0)),      # b22
    ]
    out_specs = pl.BlockSpec((1, tile_p, Cp), lambda n, p: (n, p, 0))

    z = pl.pallas_call(
        aff_kernel,
        out_shape=jax.ShapeDtypeStruct((N, Pp, Cp), out_dtype),
        grid_spec=pltpu.PrefetchScalarGridSpec(
            num_scalar_prefetch=0,
            grid=grid,
            in_specs=in_specs,
            out_specs=out_specs,
        ),
        compiler_params=pltpu.CompilerParams(
            # batch AND spatial tiles shard across TensorCores (v7x megacore)
            dimension_semantics=("parallel", "parallel"),
            vmem_limit_bytes=vmem_limit_bytes,
        ),
    )(x3, y3, g2, w21, b21, w22, b22)

    return z[:, :P, :C].reshape(N, H, W, C)


# ----------------------------------------------------------------------------
# Pure-JAX reference (NHWC, mirrors the PyTorch forward exactly, f32)
# ----------------------------------------------------------------------------
def aff_reference(X, Y, params):
    def pw(t, w):                       # 1x1 conv, w: (out, in), channels-last
        return jnp.einsum("nhwc,oc->nhwo", t, w)

    def bn(t, s, b):                    # eval-mode BN (folded scale/shift)
        return t * s.reshape(1, 1, 1, -1) + b.reshape(1, 1, 1, -1)

    x = X + Y
    g = jnp.mean(x, axis=(1, 2), keepdims=True)
    g = jnp.maximum(bn(pw(g, params["W11"]), params["s11"], params["b11"]), 0.0)
    g = bn(pw(g, params["W12"]), params["s12"], params["b12"])
    l = jnp.maximum(bn(pw(x, params["W21"]), params["s21"], params["b21"]), 0.0)
    l = bn(pw(l, params["W22"]), params["s22"], params["b22"])
    M = jax.nn.sigmoid(g + l) * x       # MS_CAM output
    return M * X + (1.0 - M) * Y        # AFF


if __name__ == "__main__":
    # small but lane-friendly shapes: C a multiple of 128 so stores are
    # lane-dense; P = 256 exercises the (batch, spatial-tile) grid.
    N, C, H, W, r = 2, 128, 16, 16, 4

    key = jax.random.PRNGKey(0)
    kx, ky, kp = jax.random.split(key, 3)
    X = jax.random.normal(kx, (N, H, W, C), jnp.float32)
    Y = jax.random.normal(ky, (N, H, W, C), jnp.float32)
    params = init_params(kp, C, r)

    fwd = jax.jit(aff_forward)
    Z = jax.block_until_ready(fwd(X, Y, params))

    # f32 reference; residual mismatch is the bf16 matmul-operand rounding in
    # the local branch plus the bf16 output store (documented precision contract).
    Z_ref = aff_reference(X, Y, params)
    np.testing.assert_allclose(np.asarray(Z.astype(jnp.float32)), np.asarray(Z_ref),
                               rtol=5e-2, atol=2e-1)
    print("KERNEL_OK")
</pallas_src>

<mosaic_0001>
module attributes {stable_mosaic.version = 11 : i64} {
  func.func @aff_kernel(%arg0: i32, %arg1: i32, %arg2: memref<1x256x128xf32, #tpu.memory_space<vmem>>, %arg3: memref<1x256x128xf32, #tpu.memory_space<vmem>>, %arg4: memref<1x1x128xf32, #tpu.memory_space<vmem>>, %arg5: memref<128x32xbf16, #tpu.memory_space<vmem>>, %arg6: memref<1x32xf32, #tpu.memory_space<vmem>>, %arg7: memref<32x128xbf16, #tpu.memory_space<vmem>>, %arg8: memref<1x128xf32, #tpu.memory_space<vmem>>, %arg9: memref<1x256x128xbf16, #tpu.memory_space<vmem>>) attributes {dimension_semantics = [#tpu.dimension_semantics<parallel>, #tpu.dimension_semantics<parallel>], iteration_bounds = array<i64: 2, 1>, scalar_prefetch = 0 : i64, scratch_operands = 0 : i64, tpu.core_type = #tpu.core_type<tc>, window_params = [{transform_indices = @transform_0, window_bounds = array<i64: 1, 256, 128>}, {transform_indices = @transform_1, window_bounds = array<i64: 1, 256, 128>}, {transform_indices = @transform_2, window_bounds = array<i64: 1, 1, 128>}, {pipeline_mode = #tpu.pipeline_mode<synchronous>, transform_indices = @transform_3, window_bounds = array<i64: 128, 32>}, {pipeline_mode = #tpu.pipeline_mode<synchronous>, transform_indices = @transform_4, window_bounds = array<i64: 1, 32>}, {pipeline_mode = #tpu.pipeline_mode<synchronous>, transform_indices = @transform_5, window_bounds = array<i64: 32, 128>}, {pipeline_mode = #tpu.pipeline_mode<synchronous>, transform_indices = @transform_6, window_bounds = array<i64: 1, 128>}, {transform_indices = @transform_7, window_bounds = array<i64: 1, 256, 128>}]} {
    %c0 = arith.constant 0 : index
    %c0_0 = arith.constant 0 : index
    %c0_1 = arith.constant 0 : index
    %0 = vector.load %arg2[%c0, %c0_0, %c0_1] : memref<1x256x128xf32, #tpu.memory_space<vmem>>, vector<1x256x128xf32>
    %1 = vector.shape_cast %0 : vector<1x256x128xf32> to vector<256x128xf32>
    %c0_2 = arith.constant 0 : index
    %c0_3 = arith.constant 0 : index
    %c0_4 = arith.constant 0 : index
    %2 = vector.load %arg3[%c0_2, %c0_3, %c0_4] : memref<1x256x128xf32, #tpu.memory_space<vmem>>, vector<1x256x128xf32>
    %3 = vector.shape_cast %2 : vector<1x256x128xf32> to vector<256x128xf32>
    %4 = arith.addf %1, %3 : vector<256x128xf32>
    %5 = arith.truncf %4 : vector<256x128xf32> to vector<256x128xbf16>
    %c0_5 = arith.constant 0 : index
    %c0_6 = arith.constant 0 : index
    %6 = vector.load %arg5[%c0_5, %c0_6] : memref<128x32xbf16, #tpu.memory_space<vmem>>, vector<128x32xbf16>
    %cst = arith.constant dense<0.000000e+00> : vector<256x32xf32>
    %7 = tpu.matmul %5, %6, %cst {dimension_numbers = #tpu.dot_dimension_numbers<[1], [0], [0], [1], [0, 0, 1, 1], [], []>} : vector<256x128xbf16>, vector<128x32xbf16>, vector<256x32xf32> -> vector<256x32xf32>
    %c0_7 = arith.constant 0 : index
    %c0_8 = arith.constant 0 : index
    %8 = vector.load %arg6[%c0_7, %c0_8] : memref<1x32xf32, #tpu.memory_space<vmem>>, vector<1x32xf32>
    %9 = vector.broadcast %8 : vector<1x32xf32> to vector<256x32xf32>
    %10 = arith.addf %7, %9 : vector<256x32xf32>
    %cst_9 = arith.constant 0.000000e+00 : f32
    %11 = vector.broadcast %cst_9 : f32 to vector<256x32xf32>
    %12 = arith.maximumf %10, %11 : vector<256x32xf32>
    %13 = arith.truncf %12 : vector<256x32xf32> to vector<256x32xbf16>
    %c0_10 = arith.constant 0 : index
    %c0_11 = arith.constant 0 : index
    %14 = vector.load %arg7[%c0_10, %c0_11] : memref<32x128xbf16, #tpu.memory_space<vmem>>, vector<32x128xbf16>
    %cst_12 = arith.constant dense<0.000000e+00> : vector<256x128xf32>
    %15 = tpu.matmul %13, %14, %cst_12 {dimension_numbers = #tpu.dot_dimension_numbers<[1], [0], [0], [1], [0, 0, 1, 1], [], []>} : vector<256x32xbf16>, vector<32x128xbf16>, vector<256x128xf32> -> vector<256x128xf32>
    %c0_13 = arith.constant 0 : index
    %c0_14 = arith.constant 0 : index
    %16 = vector.load %arg8[%c0_13, %c0_14] : memref<1x128xf32, #tpu.memory_space<vmem>>, vector<1x128xf32>
    %17 = vector.broadcast %16 : vector<1x128xf32> to vector<256x128xf32>
    %18 = arith.addf %15, %17 : vector<256x128xf32>
    %c0_15 = arith.constant 0 : index
    %c0_16 = arith.constant 0 : index
    %c0_17 = arith.constant 0 : index
    %19 = vector.load %arg4[%c0_15, %c0_16, %c0_17] : memref<1x1x128xf32, #tpu.memory_space<vmem>>, vector<1x1x128xf32>
    %20 = vector.shape_cast %19 : vector<1x1x128xf32> to vector<1x128xf32>
    %21 = vector.broadcast %20 : vector<1x128xf32> to vector<256x128xf32>
    %22 = arith.addf %18, %21 : vector<256x128xf32>
    %23 = arith.negf %22 : vector<256x128xf32>
    %24 = math.exp %23 : vector<256x128xf32>
    %cst_18 = arith.constant 1.000000e+00 : f32
    %25 = vector.broadcast %cst_18 : f32 to vector<256x128xf32>
    %26 = arith.addf %25, %24 : vector<256x128xf32>
    %27 = arith.divf %25, %26 : vector<256x128xf32>
    %28 = arith.mulf %27, %4 : vector<256x128xf32>
    %29 = arith.subf %1, %3 : vector<256x128xf32>
    %30 = arith.mulf %28, %29 : vector<256x128xf32>
    %31 = arith.addf %3, %30 : vector<256x128xf32>
    %32 = arith.truncf %31 : vector<256x128xf32> to vector<256x128xbf16>
    %c0_19 = arith.constant 0 : index
    %c0_20 = arith.constant 0 : index
    %c0_21 = arith.constant 0 : index
    %33 = vector.load %arg9[%c0_19, %c0_20, %c0_21] : memref<1x256x128xbf16, #tpu.memory_space<vmem>>, vector<1x256x128xbf16>
    %34 = vector.shape_cast %33 : vector<1x256x128xbf16> to vector<256x128xbf16>
    %35 = vector.shape_cast %32 : vector<256x128xbf16> to vector<1x256x128xbf16>
    tpu.vector_store %arg9[%c0_19, %c0_20, %c0_21], %35 {strides = array<i32>} : memref<1x256x128xbf16, #tpu.memory_space<vmem>>, vector<1x256x128xbf16>,
    return
  }
  func.func @transform_0(%arg0: i32, %arg1: i32) -> (i32, i32, i32) {
    %c0_i32 = arith.constant 0 : i32
    %c0_i32_0 = arith.constant 0 : i32
    return %arg0, %arg1, %c0_i32 : i32, i32, i32
  }
  func.func @transform_1(%arg0: i32, %arg1: i32) -> (i32, i32, i32) {
    %c0_i32 = arith.constant 0 : i32
    %c0_i32_0 = arith.constant 0 : i32
    return %arg0, %arg1, %c0_i32 : i32, i32, i32
  }
  func.func @transform_2(%arg0: i32, %arg1: i32) -> (i32, i32, i32) {
    %c0_i32 = arith.constant 0 : i32
    %c0_i32_0 = arith.constant 0 : i32
    %c0_i32_1 = arith.constant 0 : i32
    return %arg0, %c0_i32, %c0_i32_0 : i32, i32, i32
  }
  func.func @transform_3(%arg0: i32, %arg1: i32) -> (i32, i32) {
    %c0_i32 = arith.constant 0 : i32
    %c0_i32_0 = arith.constant 0 : i32
    %c0_i32_1 = arith.constant 0 : i32
    return %c0_i32, %c0_i32_0 : i32, i32
  }
  func.func @transform_4(%arg0: i32, %arg1: i32) -> (i32, i32) {
    %c0_i32 = arith.constant 0 : i32
    %c0_i32_0 = arith.constant 0 : i32
    %c0_i32_1 = arith.constant 0 : i32
    return %c0_i32, %c0_i32_0 : i32, i32
  }
  func.func @transform_5(%arg0: i32, %arg1: i32) -> (i32, i32) {
    %c0_i32 = arith.constant 0 : i32
    %c0_i32_0 = arith.constant 0 : i32
    %c0_i32_1 = arith.constant 0 : i32
    return %c0_i32, %c0_i32_0 : i32, i32
  }
  func.func @transform_6(%arg0: i32, %arg1: i32) -> (i32, i32) {
    %c0_i32 = arith.constant 0 : i32
    %c0_i32_0 = arith.constant 0 : i32
    %c0_i32_1 = arith.constant 0 : i32
    return %c0_i32, %c0_i32_0 : i32, i32
  }
  func.func @transform_7(%arg0: i32, %arg1: i32) -> (i32, i32, i32) {
    %c0_i32 = arith.constant 0 : i32
    %c0_i32_0 = arith.constant 0 : i32
    return %arg0, %arg1, %c0_i32 : i32, i32, i32
  }
}

</mosaic_0001>

<llo_original>
// kernel: aff_forward.1
$region0: #{aff_forward.1}
  #allocation0 [shape = 'u32[]', space=smem, size = 0x4, offset = 0x4, fixed_abs, tag = 'smem constant byte address 0x4 - core index']
  #allocation1 [shape = 'u32[144,128]{1,0:T(1,128)}', space=vmem, size = 0x12000, scoped, tag = 'internal scratch']
  %s0 = inlined_call_operand.vmem [shape: f32[2,256,128], index: 0, kind: input, shape index: {}]
  %s1 = inlined_call_operand.vmem [shape: f32[2,256,128], index: 1, kind: input, shape index: {}]
  %s2 = inlined_call_operand.vmem [shape: f32[2,1,128], index: 2, kind: input, shape index: {}]
  %s3 = inlined_call_operand.vmem [shape: bf16[128,32], index: 3, kind: input, shape index: {}]
  %s4 = inlined_call_operand.vmem [shape: f32[1,32], index: 4, kind: input, shape index: {}]
  %s5 = inlined_call_operand.vmem [shape: bf16[32,128], index: 5, kind: input, shape index: {}]
  %s6 = inlined_call_operand.vmem [shape: f32[1,128], index: 6, kind: input, shape index: {}]
  %s7 = inlined_call_operand.hbm [shape: bf16[2,256,128], index: 7, kind: output, shape index: {}]
  %s8 = sld [smem:[#allocation0]]
  $region61: #{aff_forward.1} parent=0
    _
  %s10 = ssub.s32 1, %s8
  %s11 = scalar_select 0, %s10, %s8
  $region1: #{aff_forward.1} parent=0
    #allocation2 [shape = 'u8[131072]{0}', space=vmem, size = 0x20000, scoped, tag = 'output window, operand 0']
    #allocation3 [shape = 's32[2]{0}', space=sflag, size = 0x8, scoped, tag = 'scoped memory for aff_forward.1']
    %12 = vsyncpa [#allocation3], 0
    %s13 = scalar_lea.sflag [#allocation3], 1
    %14 = vsyncpa %s13, 0
    loop: start=0, step=1, limit=4
    $region2: #{aff_forward.1} parent=1 // loop_pre_header
      _
    $region3: #{aff_forward.1} parent=1 // loop_header
      %s16 = sphi 0, %s20
      %p17 = scmp.ge.s32.totalorder %s16, 4
      %s23 = sphi 0, %s35
      %s24 = sphi 0, %s31
      %s25 = sphi 0, %s23
      %s26 = sphi 0, %s24
      %s27 = sphi 0, %s25
      %s28 = sphi 0, %s26
      %s40 = sphi 0, %s42
      %s43 = sphi 0, %s40
      %s44 = sphi 0, %s43
      %s60 = sphi 0, %s44
      %s68 = sphi 0, %s70
      %s71 = sphi 0, %s68
      %s72 = sphi 0, %s71
      %s88 = sphi 0, %s72
      %s94 = sphi 0, %s96
      %s97 = sphi 0, %s94
      %s98 = sphi 0, %s97
      %s114 = sphi 0, %s98
      %s118 = sphi 0, %s118
      %s120 = sphi 0, %s118
      %s121 = sphi 0, %s120
      %s135 = sphi 0, %s121
      %s139 = sphi 0, %s139
      %s141 = sphi 0, %s139
      %s142 = sphi 0, %s141
      %s156 = sphi 0, %s142
      %s160 = sphi 0, %s160
      %s162 = sphi 0, %s160
      %s163 = sphi 0, %s162
      %s177 = sphi 0, %s163
      %s181 = sphi 0, %s181
      %s183 = sphi 0, %s181
      %s184 = sphi 0, %s183
      %s198 = sphi 0, %s184
      %s206 = sphi 0, %s208
      %s209 = sphi 0, %s206
      %s210 = sphi 0, %s209
      %s226 = sphi 0, %s210
    $region4: #{aff_forward.1} parent=1 // loop_header_branch
      %19 = sbr.rel (%p17) target = $region8
    $region5: #{aff_forward.1} parent=1 // loop_body
      %s21 = ssub.s32 %s16, 1
      %s22 = ssub.s32 %s16, 2
      %s29 = sadd.s32 1, %s24
      %p30 = scmp.ge.s32.totalorder %s29, 1
      %s31 = scalar_select %p30, 0, %s29
      %s32 = sadd.s32 1, %s23
      %s33 = scalar_select %p30, %s32, %s23
      %p34 = scmp.ge.s32.totalorder %s33, 2
      %s35 = scalar_select %p34, 0, %s33
      %s36 = ssub.s32 %s23, %s35
      %s37 = ssub.s32 %s24, %s31
      %s38 = sor.u32 %s36, %s37
      %p39 = scmp.eq.s32.totalorder %s38, 0
      %s41 = sadd.s32 %s40, 1
      %s42 = scalar_select %p39, %s40, %s41
      %p45 = pneg %p39
      %p46 = scmp.eq.s32.totalorder %s16, 1
      %p47 = por %p45, %p46
      %p48 = scmp.ne.s32.totalorder %s40, %s43
      %p49 = scmp.eq.s32.totalorder %s16, 0
      %p50 = por %p48, %p49
      %p51 = scmp.ne.s32.totalorder %s40, %s43
      %p52 = scmp.eq.s32.totalorder %s21, 1
      %p53 = por %p51, %p52
      %p54 = scmp.ne.s32.totalorder %s43, %s44
      %p55 = scmp.eq.s32.totalorder %s21, 0
      %p56 = por %p54, %p55
      %p57 = scmp.ne.s32.totalorder %s43, %s44
      %p58 = scmp.eq.s32.totalorder %s22, 1
      %p59 = por %p57, %p58
      %p61 = scmp.ne.s32.totalorder %s44, %s60
      %p62 = scmp.eq.s32.totalorder %s22, 0
      %p63 = por %p61, %p62
      %s64 = ssub.s32 %s23, %s35
      %s65 = ssub.s32 %s24, %s31
      %s66 = sor.u32 %s64, %s65
      %p67 = scmp.eq.s32.totalorder %s66, 0
      %s69 = sadd.s32 %s68, 1
      %s70 = scalar_select %p67, %s68, %s69
      %p73 = pneg %p67
      %p74 = scmp.eq.s32.totalorder %s16, 1
      %p75 = por %p73, %p74
      %p76 = scmp.ne.s32.totalorder %s68, %s71
      %p77 = scmp.eq.s32.totalorder %s16, 0
      %p78 = por %p76, %p77
      %p79 = scmp.ne.s32.totalorder %s68, %s71
      %p80 = scmp.eq.s32.totalorder %s21, 1
      %p81 = por %p79, %p80
      %p82 = scmp.ne.s32.totalorder %s71, %s72
      %p83 = scmp.eq.s32.totalorder %s21, 0
      %p84 = por %p82, %p83
      %p85 = scmp.ne.s32.totalorder %s71, %s72
      %p86 = scmp.eq.s32.totalorder %s22, 1
      %p87 = por %p85, %p86
      %p89 = scmp.ne.s32.totalorder %s72, %s88
      %p90 = scmp.eq.s32.totalorder %s22, 0
      %p91 = por %p89, %p90
      %s92 = ssub.s32 %s23, %s35
      %p93 = scmp.eq.s32.totalorder %s92, 0
      %s95 = sadd.s32 %s94, 1
      %s96 = scalar_select %p93, %s94, %s95
      %p99 = pneg %p93
      %p100 = scmp.eq.s32.totalorder %s16, 1
      %p101 = por %p99, %p100
      %p102 = scmp.ne.s32.totalorder %s94, %s97
      %p103 = scmp.eq.s32.totalorder %s16, 0
      %p104 = por %p102, %p103
      %p105 = scmp.ne.s32.totalorder %s94, %s97
      %p106 = scmp.eq.s32.totalorder %s21, 1
      %p107 = por %p105, %p106
      %p108 = scmp.ne.s32.totalorder %s97, %s98
      %p109 = scmp.eq.s32.totalorder %s21, 0
      %p110 = por %p108, %p109
      %p111 = scmp.ne.s32.totalorder %s97, %s98
      %p112 = scmp.eq.s32.totalorder %s22, 1
      %p113 = por %p111, %p112
      %p115 = scmp.ne.s32.totalorder %s98, %s114
      %p116 = scmp.eq.s32.totalorder %s22, 0
      %p117 = por %p115, %p116
      %s119 = sadd.s32 %s118, 1
      %p122 = scmp.eq.s32.totalorder %s16, 1
      %p123 = scmp.ne.s32.totalorder %s118, %s120
      %p124 = scmp.eq.s32.totalorder %s16, 0
      %p125 = por %p123, %p124
      %p126 = scmp.ne.s32.totalorder %s118, %s120
      %p127 = scmp.eq.s32.totalorder %s21, 1
      %p128 = por %p126, %p127
      %p129 = scmp.ne.s32.totalorder %s120, %s121
      %p130 = scmp.eq.s32.totalorder %s21, 0
      %p131 = por %p129, %p130
      %p132 = scmp.ne.s32.totalorder %s120, %s121
      %p133 = scmp.eq.s32.totalorder %s22, 1
      %p134 = por %p132, %p133
      %p136 = scmp.ne.s32.totalorder %s121, %s135
      %p137 = scmp.eq.s32.totalorder %s22, 0
      %p138 = por %p136, %p137
      %s140 = sadd.s32 %s139, 1
      %p143 = scmp.eq.s32.totalorder %s16, 1
      %p144 = scmp.ne.s32.totalorder %s139, %s141
      %p145 = scmp.eq.s32.totalorder %s16, 0
      %p146 = por %p144, %p145
      %p147 = scmp.ne.s32.totalorder %s139, %s141
      %p148 = scmp.eq.s32.totalorder %s21, 1
      %p149 = por %p147, %p148
      %p150 = scmp.ne.s32.totalorder %s141, %s142
      %p151 = scmp.eq.s32.totalorder %s21, 0
      %p152 = por %p150, %p151
      %p153 = scmp.ne.s32.totalorder %s141, %s142
      %p154 = scmp.eq.s32.totalorder %s22, 1
      %p155 = por %p153, %p154
      %p157 = scmp.ne.s32.totalorder %s142, %s156
      %p158 = scmp.eq.s32.totalorder %s22, 0
      %p159 = por %p157, %p158
      %s161 = sadd.s32 %s160, 1
      %p164 = scmp.eq.s32.totalorder %s16, 1
      %p165 = scmp.ne.s32.totalorder %s160, %s162
      %p166 = scmp.eq.s32.totalorder %s16, 0
      %p167 = por %p165, %p166
      %p168 = scmp.ne.s32.totalorder %s160, %s162
      %p169 = scmp.eq.s32.totalorder %s21, 1
      %p170 = por %p168, %p169
      %p171 = scmp.ne.s32.totalorder %s162, %s163
      %p172 = scmp.eq.s32.totalorder %s21, 0
      %p173 = por %p171, %p172
      %p174 = scmp.ne.s32.totalorder %s162, %s163
      %p175 = scmp.eq.s32.totalorder %s22, 1
      %p176 = por %p174, %p175
      %p178 = scmp.ne.s32.totalorder %s163, %s177
      %p179 = scmp.eq.s32.totalorder %s22, 0
      %p180 = por %p178, %p179
      %s182 = sadd.s32 %s181, 1
      %p185 = scmp.eq.s32.totalorder %s16, 1
      %p186 = scmp.ne.s32.totalorder %s181, %s183
      %p187 = scmp.eq.s32.totalorder %s16, 0
      %p188 = por %p186, %p187
      %p189 = scmp.ne.s32.totalorder %s181, %s183
      %p190 = scmp.eq.s32.totalorder %s21, 1
      %p191 = por %p189, %p190
      %p192 = scmp.ne.s32.totalorder %s183, %s184
      %p193 = scmp.eq.s32.totalorder %s21, 0
      %p194 = por %p192, %p193
      %p195 = scmp.ne.s32.totalorder %s183, %s184
      %p196 = scmp.eq.s32.totalorder %s22, 1
      %p197 = por %p195, %p196
      %p199 = scmp.ne.s32.totalorder %s184, %s198
      %p200 = scmp.eq.s32.totalorder %s22, 0
      %p201 = por %p199, %p200
      %s202 = ssub.s32 %s23, %s35
      %s203 = ssub.s32 %s24, %s31
      %s204 = sor.u32 %s202, %s203
      %p205 = scmp.eq.s32.totalorder %s204, 0
      %s207 = sadd.s32 %s206, 1
      %s208 = scalar_select %p205, %s206, %s207
      %p211 = pneg %p205
      %p212 = scmp.eq.s32.totalorder %s16, 1
      %p213 = por %p211, %p212
      %p214 = scmp.ne.s32.totalorder %s206, %s209
      %p215 = scmp.eq.s32.totalorder %s16, 0
      %p216 = por %p214, %p215
      %p217 = scmp.ne.s32.totalorder %s206, %s209
      %p218 = scmp.eq.s32.totalorder %s21, 1
      %p219 = por %p217, %p218
      %p220 = scmp.ne.s32.totalorder %s209, %s210
      %p221 = scmp.eq.s32.totalorder %s21, 0
      %p222 = por %p220, %p221
      %p223 = scmp.ne.s32.totalorder %s209, %s210
      %p224 = scmp.eq.s32.totalorder %s22, 1
      %p225 = por %p223, %p224
      %p227 = scmp.ne.s32.totalorder %s210, %s226
      %p228 = scmp.eq.s32.totalorder %s22, 0
      %p229 = por %p227, %p228
      %p230 = scmp.le.s32.totalorder 1, %s16
      %p231 = scmp.lt.s32.totalorder %s16, 3
      %p232 = pnand %p230, %p231
      %p233 = pneg %p232
      // Predicated region
      $region9: #{aff_forward.1} parent=5 // pred_check
        _
      $region10: #{aff_forward.1} parent=5 // pred_check_branch
        %235 = sbr.rel (%p232) target = $region12
      $region11: #{aff_forward.1} parent=5 // pred_region
        %s236 = ssub.s32 %s16, 1
        // Predicated region
        $region13: #{aff_forward.1} parent=11 // pred_check
          %p237 = pneg %p131
        $region14: #{aff_forward.1} parent=11 // pred_check_branch
          %239 = sbr.rel (%p237) target = $region16
        $region15: #{aff_forward.1} parent=11 // pred_region
          _
        $region16: #{aff_forward.1} parent=11 // pred_fallthru
          _
        // Predicated region
        $region17: #{aff_forward.1} parent=11 // pred_check
          %p240 = pneg %p152
        $region18: #{aff_forward.1} parent=11 // pred_check_branch
          %242 = sbr.rel (%p240) target = $region20
        $region19: #{aff_forward.1} parent=11 // pred_region
          _
        $region20: #{aff_forward.1} parent=11 // pred_fallthru
          _
        // Predicated region
        $region21: #{aff_forward.1} parent=11 // pred_check
          %p243 = pneg %p173
        $region22: #{aff_forward.1} parent=11 // pred_check_branch
          %245 = sbr.rel (%p243) target = $region24
        $region23: #{aff_forward.1} parent=11 // pred_region
          _
        $region24: #{aff_forward.1} parent=11 // pred_fallthru
          _
        // Predicated region
        $region25: #{aff_forward.1} parent=11 // pred_check
          %p246 = pneg %p194
        $region26: #{aff_forward.1} parent=11 // pred_check_branch
          %248 = sbr.rel (%p246) target = $region28
        $region27: #{aff_forward.1} parent=11 // pred_region
          _
        $region28: #{aff_forward.1} parent=11 // pred_fallthru
          _
      $region12: #{aff_forward.1} parent=5 // pred_fallthru
        _
      %p249 = scmp.lt.s32.totalorder %s16, 2
      // Predicated region
      $region29: #{aff_forward.1} parent=5 // pred_check
        %p250 = pneg %p249
      $region30: #{aff_forward.1} parent=5 // pred_check_branch
        %252 = sbr.rel (%p250) target = $region32
      $region31: #{aff_forward.1} parent=5 // pred_region
        // Predicated region
        $region33: #{aff_forward.1} parent=31 // pred_check
          %p253 = pneg %p50
        $region34: #{aff_forward.1} parent=31 // pred_check_branch
          %255 = sbr.rel (%p253) target = $region36
        $region35: #{aff_forward.1} parent=31 // pred_region
          %s256 = smul.u32 32, %s24
          %p257 = scmp.lt.s32.totalorder %s23, 1
          %s258 = scalar_select %p257, %s23, 1
          %p259 = scmp.lt.s32.totalorder %s256, 31
          %s260 = scalar_select %p259, %s256, 31
          %s261 = smul.addr %s258, 32
          %s262 = sadd.s32 %s260, %s261
          %s263 = smul.addr %s262, 8
          %s264 = scalar_lea.vmem %s0, %s263
          %s265 = smul.u32 32, %s24
        $region36: #{aff_forward.1} parent=31 // pred_fallthru
          _
        // Predicated region
        $region37: #{aff_forward.1} parent=31 // pred_check
          %p266 = pneg %p78
        $region38: #{aff_forward.1} parent=31 // pred_check_branch
          %268 = sbr.rel (%p266) target = $region40
        $region39: #{aff_forward.1} parent=31 // pred_region
          %s269 = smul.u32 32, %s24
          %p270 = scmp.lt.s32.totalorder %s23, 1
          %s271 = scalar_select %p270, %s23, 1
          %p272 = scmp.lt.s32.totalorder %s269, 31
          %s273 = scalar_select %p272, %s269, 31
          %s274 = smul.addr %s271, 32
          %s275 = sadd.s32 %s273, %s274
          %s276 = smul.addr %s275, 8
          %s277 = scalar_lea.vmem %s1, %s276
          %s278 = smul.u32 32, %s24
        $region40: #{aff_forward.1} parent=31 // pred_fallthru
          _
        // Predicated region
        $region41: #{aff_forward.1} parent=31 // pred_check
          %p279 = pneg %p104
        $region42: #{aff_forward.1} parent=31 // pred_check_branch
          %281 = sbr.rel (%p279) target = $region44
        $region43: #{aff_forward.1} parent=31 // pred_region
          %p282 = scmp.lt.s32.totalorder %s23, 1
          %s283 = scalar_select %p282, %s23, 1
          %s284 = scalar_lea.vmem %s2, %s283
        $region44: #{aff_forward.1} parent=31 // pred_fallthru
          _
      $region32: #{aff_forward.1} parent=5 // pred_fallthru
        _
      %p285 = scmp.le.s32.totalorder 1, %s16
      %p286 = scmp.lt.s32.totalorder %s16, 3
      %p287 = pnand %p285, %p286
      %p288 = pneg %p287
      // Predicated region
      $region45: #{aff_forward.1} parent=5 // pred_check
        _
      $region46: #{aff_forward.1} parent=5 // pred_check_branch
        %290 = sbr.rel (%p287) target = $region48
      $region47: #{aff_forward.1} parent=5 // pred_region
        %s291 = ssub.s32 %s16, 1
        %s292 = smul.u32 32, %s26
        %p293 = scmp.lt.s32.totalorder %s25, 1
        %s294 = scalar_select %p293, %s25, 1
        %p295 = scmp.lt.s32.totalorder %s292, 31
        %s296 = scalar_select %p295, %s292, 31
        %s297 = smul.addr %s294, 32
        %s298 = sadd.s32 %s296, %s297
        %s299 = smul.addr %s298, 8
        %s300 = scalar_lea.vmem %s0, %s299
        %p301 = pneg %p56
        %p302 = pneg %p53
        %s303 = smul.u32 32, %s26
        %p304 = scmp.lt.s32.totalorder %s25, 1
        %s305 = scalar_select %p304, %s25, 1
        %p306 = scmp.lt.s32.totalorder %s303, 31
        %s307 = scalar_select %p306, %s303, 31
        %s308 = smul.addr %s305, 32
        %s309 = sadd.s32 %s307, %s308
        %s310 = smul.addr %s309, 8
        %s311 = scalar_lea.vmem %s1, %s310
        %p312 = pneg %p84
        %p313 = pneg %p81
        %p314 = scmp.lt.s32.totalorder %s25, 1
        %s315 = scalar_select %p314, %s25, 1
        %s316 = scalar_lea.vmem %s2, %s315
        %p317 = pneg %p110
        %p318 = pneg %p107
        %p319 = pneg %p131
        %p320 = pneg %p128
        %p321 = pneg %p152
        %p322 = pneg %p149
        %p323 = pneg %p173
        %p324 = pneg %p170
        %p325 = pneg %p194
        %p326 = pneg %p191
        %p327 = pneg %p222
        %p328 = pneg %p219
        %s329 = sand.u32 %s209, 1
        %s330 = scalar_lea.sflag [#allocation3], %s329
        %s331 = sand.u32 %s209, 1
        %s332 = smul.addr %s331, 128
        %s333 = scalar_lea.vmem [#allocation2], %s332
        %s334 = smul.u32 32, %s26
        %p335 = scmp.lt.s32.totalorder %s25, 1
        %s336 = scalar_select %p335, %s25, 1
        %p337 = scmp.lt.s32.totalorder %s334, 31
        %s338 = scalar_select %p337, %s334, 31
        %s339 = smul.addr %s336, 32
        %s340 = sadd.s32 %s338, %s339
        %s341 = smul.addr %s340, 8
        %s342 = scalar_lea.vmem %s0, %s341
        %s343 = smul.u32 32, %s26
        %s344 = smul.u32 32, %s26
        %p345 = scmp.lt.s32.totalorder %s25, 1
        %s346 = scalar_select %p345, %s25, 1
        %p347 = scmp.lt.s32.totalorder %s344, 31
        %s348 = scalar_select %p347, %s344, 31
        %s349 = smul.addr %s346, 32
        %s350 = sadd.s32 %s348, %s349
        %s351 = smul.addr %s350, 8
        %s352 = scalar_lea.vmem %s1, %s351
        %s353 = smul.u32 32, %s26
        %p354 = scmp.lt.s32.totalorder %s25, 1
        %s355 = scalar_select %p354, %s25, 1
        %s356 = scalar_lea.vmem %s2, %s355
        %s357 = smul.u32 32, %s26
        %v359 = vld [vmem:[%s342] sm:$0xff]
        %v360 = vld [vmem:[%s342 + $0x8] sm:$0xff]
        %v361 = vld [vmem:[%s342 + $0x10] sm:$0xff]
        %v362 = vld [vmem:[%s342 + $0x18] sm:$0xff]
        %v363 = vld [vmem:[%s342 + $0x20] sm:$0xff]
        %v364 = vld [vmem:[%s342 + $0x28] sm:$0xff]
        %v365 = vld [vmem:[%s342 + $0x30] sm:$0xff]
        %v366 = vld [vmem:[%s342 + $0x38] sm:$0xff]
        %v367 = vld [vmem:[%s342 + $0x40] sm:$0xff]
        %v368 = vld [vmem:[%s342 + $0x48] sm:$0xff]
        %v369 = vld [vmem:[%s342 + $0x50] sm:$0xff]
        %v370 = vld [vmem:[%s342 + $0x58] sm:$0xff]
        %v371 = vld [vmem:[%s342 + $0x60] sm:$0xff]
        %v372 = vld [vmem:[%s342 + $0x68] sm:$0xff]
        %v373 = vld [vmem:[%s342 + $0x70] sm:$0xff]
        %v374 = vld [vmem:[%s342 + $0x78] sm:$0xff]
        %v375 = vld [vmem:[%s342 + $0x80] sm:$0xff]
        %v376 = vld [vmem:[%s342 + $0x88] sm:$0xff]
        %v377 = vld [vmem:[%s342 + $0x90] sm:$0xff]
        %v378 = vld [vmem:[%s342 + $0x98] sm:$0xff]
        %v379 = vld [vmem:[%s342 + $0xa0] sm:$0xff]
        %v380 = vld [vmem:[%s342 + $0xa8] sm:$0xff]
        %v381 = vld [vmem:[%s342 + $0xb0] sm:$0xff]
        %v382 = vld [vmem:[%s342 + $0xb8] sm:$0xff]
        %v383 = vld [vmem:[%s342 + $0xc0] sm:$0xff]
        %v384 = vld [vmem:[%s342 + $0xc8] sm:$0xff]
        %v385 = vld [vmem:[%s342 + $0xd0] sm:$0xff]
        %v386 = vld [vmem:[%s342 + $0xd8] sm:$0xff]
        %v387 = vld [vmem:[%s342 + $0xe0] sm:$0xff]
        %v388 = vld [vmem:[%s342 + $0xe8] sm:$0xff]
        %v389 = vld [vmem:[%s342 + $0xf0] sm:$0xff]
        %v390 = vld [vmem:[%s342 + $0xf8] sm:$0xff]
        %v391 = vld [vmem:[%s352] sm:$0xff]
        %v392 = vld [vmem:[%s352 + $0x8] sm:$0xff]
        %v393 = vld [vmem:[%s352 + $0x10] sm:$0xff]
        %v394 = vld [vmem:[%s352 + $0x18] sm:$0xff]
        %v395 = vld [vmem:[%s352 + $0x20] sm:$0xff]
        %v396 = vld [vmem:[%s352 + $0x28] sm:$0xff]
        %v397 = vld [vmem:[%s352 + $0x30] sm:$0xff]
        %v398 = vld [vmem:[%s352 + $0x38] sm:$0xff]
        %v399 = vld [vmem:[%s352 + $0x40] sm:$0xff]
        %v400 = vld [vmem:[%s352 + $0x48] sm:$0xff]
        %v401 = vld [vmem:[%s352 + $0x50] sm:$0xff]
        %v402 = vld [vmem:[%s352 + $0x58] sm:$0xff]
        %v403 = vld [vmem:[%s352 + $0x60] sm:$0xff]
        %v404 = vld [vmem:[%s352 + $0x68] sm:$0xff]
        %v405 = vld [vmem:[%s352 + $0x70] sm:$0xff]
        %v406 = vld [vmem:[%s352 + $0x78] sm:$0xff]
        %v407 = vld [vmem:[%s352 + $0x80] sm:$0xff]
        %v408 = vld [vmem:[%s352 + $0x88] sm:$0xff]
        %v409 = vld [vmem:[%s352 + $0x90] sm:$0xff]
        %v410 = vld [vmem:[%s352 + $0x98] sm:$0xff]
        %v411 = vld [vmem:[%s352 + $0xa0] sm:$0xff]
        %v412 = vld [vmem:[%s352 + $0xa8] sm:$0xff]
        %v413 = vld [vmem:[%s352 + $0xb0] sm:$0xff]
        %v414 = vld [vmem:[%s352 + $0xb8] sm:$0xff]
        %v415 = vld [vmem:[%s352 + $0xc0] sm:$0xff]
        %v416 = vld [vmem:[%s352 + $0xc8] sm:$0xff]
        %v417 = vld [vmem:[%s352 + $0xd0] sm:$0xff]
        %v418 = vld [vmem:[%s352 + $0xd8] sm:$0xff]
        %v419 = vld [vmem:[%s352 + $0xe0] sm:$0xff]
        %v420 = vld [vmem:[%s352 + $0xe8] sm:$0xff]
        %v421 = vld [vmem:[%s352 + $0xf0] sm:$0xff]
        %v422 = vld [vmem:[%s352 + $0xf8] sm:$0xff]
        %v423 = vadd.f32 %v359, %v391
        %v424 = vadd.f32 %v360, %v392
        %v425 = vadd.f32 %v361, %v393
        %v426 = vadd.f32 %v362, %v394
        %v427 = vadd.f32 %v363, %v395
        %v428 = vadd.f32 %v364, %v396
        %v429 = vadd.f32 %v365, %v397
        %v430 = vadd.f32 %v366, %v398
        %v431 = vadd.f32 %v367, %v399
        %v432 = vadd.f32 %v368, %v400
        %v433 = vadd.f32 %v369, %v401
        %v434 = vadd.f32 %v370, %v402
        %v435 = vadd.f32 %v371, %v403
        %v436 = vadd.f32 %v372, %v404
        %v437 = vadd.f32 %v373, %v405
        %v438 = vadd.f32 %v374, %v406
        %v439 = vadd.f32 %v375, %v407
        %v440 = vadd.f32 %v376, %v408
        %v441 = vadd.f32 %v377, %v409
        %v442 = vadd.f32 %v378, %v410
        %v443 = vadd.f32 %v379, %v411
        %v444 = vadd.f32 %v380, %v412
        %v445 = vadd.f32 %v381, %v413
        %v446 = vadd.f32 %v382, %v414
        %v447 = vadd.f32 %v383, %v415
        %v448 = vadd.f32 %v384, %v416
        %v449 = vadd.f32 %v385, %v417
        %v450 = vadd.f32 %v386, %v418
        %v451 = vadd.f32 %v387, %v419
        %v452 = vadd.f32 %v388, %v420
        %v453 = vadd.f32 %v389, %v421
        %v454 = vadd.f32 %v390, %v422
        %v455 = vpack.c.bf16 %v424, %v423
        %v456 = vpack.c.bf16 %v426, %v425
        %v457 = vpack.c.bf16 %v428, %v427
        %v458 = vpack.c.bf16 %v430, %v429
        %v459 = vpack.c.bf16 %v432, %v431
        %v460 = vpack.c.bf16 %v434, %v433
        %v461 = vpack.c.bf16 %v436, %v435
        %v462 = vpack.c.bf16 %v438, %v437
        %v463 = vpack.c.bf16 %v440, %v439
        %v464 = vpack.c.bf16 %v442, %v441
        %v465 = vpack.c.bf16 %v444, %v443
        %v466 = vpack.c.bf16 %v446, %v445
        %v467 = vpack.c.bf16 %v448, %v447
        %v468 = vpack.c.bf16 %v450, %v449
        %v469 = vpack.c.bf16 %v452, %v451
        %v470 = vpack.c.bf16 %v454, %v453
        %v471 = vld [vmem:[%s3] sm:$0xf]
        %v472 = vld [vmem:[%s3 + $0x4] sm:$0xf]
        %v473 = vld [vmem:[%s3 + $0x8] sm:$0xf]
        %v474 = vld [vmem:[%s3 + $0xc] sm:$0xf]
        %v475 = vld [vmem:[%s3 + $0x10] sm:$0xf]
        %v476 = vld [vmem:[%s3 + $0x14] sm:$0xf]
        %v477 = vld [vmem:[%s3 + $0x18] sm:$0xf]
        %v478 = vld [vmem:[%s3 + $0x1c] sm:$0xf]
        %v479 = vld [vmem:[%s3 + $0x20] sm:$0xf]
        %v480 = vld [vmem:[%s3 + $0x24] sm:$0xf]
        %v481 = vld [vmem:[%s3 + $0x28] sm:$0xf]
        %v482 = vld [vmem:[%s3 + $0x2c] sm:$0xf]
        %v483 = vld [vmem:[%s3 + $0x30] sm:$0xf]
        %v484 = vld [vmem:[%s3 + $0x34] sm:$0xf]
        %v485 = vld [vmem:[%s3 + $0x38] sm:$0xf]
        %v486 = vld [vmem:[%s3 + $0x3c] sm:$0xf]
        %v487 = vld [vmem:[%s4] sm:$0x1]
        %v489 = vlaneseq
        %v490 = vshrl.u32 %v489, 7
        %v491 = vsub.s32 0, %v490
        %v492 = vrot.slane %v487, %v491
        %v510 = vunpack.c.l.b16 %v471
        %v511 = vunpack.c.l.b16 %v472
        %v512 = vunpack.c.l.b16 %v473
        %v513 = vunpack.c.l.b16 %v474
        %v514 = vunpack.c.l.b16 %v475
        %v515 = vunpack.c.l.b16 %v476
        %v516 = vunpack.c.l.b16 %v477
        %v517 = vunpack.c.l.b16 %v478
        %v518 = vunpack.c.l.b16 %v479
        %v519 = vunpack.c.l.b16 %v480
        %v520 = vunpack.c.l.b16 %v481
        %v521 = vunpack.c.l.b16 %v482
        %v522 = vunpack.c.l.b16 %v483
        %v523 = vunpack.c.l.b16 %v484
        %v524 = vunpack.c.l.b16 %v485
        %v525 = vunpack.c.l.b16 %v486
        %v526 = vpack.c.b16 %v511, %v510
        %v527 = vpack.c.b16 %v513, %v512
        %v528 = vpack.c.b16 %v515, %v514
        %v529 = vpack.c.b16 %v517, %v516
        %v530 = vpack.c.b16 %v519, %v518
        %v531 = vpack.c.b16 %v521, %v520
        %v532 = vpack.c.b16 %v523, %v522
        %v533 = vpack.c.b16 %v525, %v524
        %542 = vmatprep.subr.bf16.mxu0 0
        %543 = vmatpush1.bf16.msra.mxu0 %v526
        %544 = vmatprep.subr.bf16.mxu0 0
        %545 = vmatpush1.bf16.msra.mxu0 %v527
        %546 = vmatprep.subr.bf16.mxu0 0
        %547 = vmatpush1.bf16.msra.mxu0 %v528
        %548 = vmatprep.subr.bf16.mxu0 0
        %549 = vmatpush1.bf16.msra.mxu0 %v529
        %550 = vmatprep.subr.bf16.mxu0 0
        %551 = vmatpush1.bf16.msra.mxu0 %v530
        %552 = vmatprep.subr.bf16.mxu0 0
        %553 = vmatpush1.bf16.msra.mxu0 %v531
        %554 = vmatprep.subr.bf16.mxu0 0
        %555 = vmatpush1.bf16.msra.mxu0 %v532
        %556 = vmatprep.subr.bf16.mxu0 0
        %557 = vmatpush1.bf16.msra.mxu0 %v533
        %558 = vmatprep.subr.bf16.mxu0 0
        %559 = vmatpush1.bf16.msra.mxu0 0
        %560 = vmatprep.subr.bf16.mxu0 0
        %561 = vmatpush1.bf16.msra.mxu0 0
        %562 = vmatprep.subr.bf16.mxu0 0
        %563 = vmatpush1.bf16.msra.mxu0 0
        %564 = vmatprep.subr.bf16.mxu0 0
        %565 = vmatpush1.bf16.msra.mxu0 0
        %566 = vmatprep.subr.bf16.mxu0 0
        %567 = vmatpush1.bf16.msra.mxu0 0
        %568 = vmatprep.subr.bf16.mxu0 0
        %569 = vmatpush1.bf16.msra.mxu0 0
        %570 = vmatprep.subr.bf16.mxu0 0
        %571 = vmatpush1.bf16.msra.mxu0 0
        %572 = vmatprep.subr.bf16.mxu0 0
        %573 = vmatpush1.bf16.msra.mxu0 0
        %574 = vmatprep.mubr.bf16.mxu0 0
        %575 = vmatmul.mubr.bf16.gmra.mrb[0].mxu0 %v455
        %v576 = vpop.f32.mrb[0].mxu0
        %v577 = vadd.f32 %v492, %v576
        %v578 = vpop.f32.mrb[0].mxu0
        %v579 = vpop.f32.mrb[0].mxu0
        %v580 = vadd.f32 %v492, %v579
        %v581 = vpop.f32.mrb[0].mxu0
        %582 = vmatprep.mubr.bf16.mxu0 0
        %583 = vmatmul.mubr.bf16.gmra.mrb[0].mxu0 %v456
        %v584 = vpop.f32.mrb[0].mxu0
        %v585 = vadd.f32 %v492, %v584
        %v586 = vpop.f32.mrb[0].mxu0
        %v587 = vpop.f32.mrb[0].mxu0
        %v588 = vadd.f32 %v492, %v587
        %v589 = vpop.f32.mrb[0].mxu0
        %590 = vmatprep.mubr.bf16.mxu0 0
        %591 = vmatmul.mubr.bf16.gmra.mrb[0].mxu0 %v457
        %v592 = vpop.f32.mrb[0].mxu0
        %v593 = vadd.f32 %v492, %v592
        %v594 = vpop.f32.mrb[0].mxu0
        %v595 = vpop.f32.mrb[0].mxu0
        %v596 = vadd.f32 %v492, %v595
        %v597 = vpop.f32.mrb[0].mxu0
        %598 = vmatprep.mubr.bf16.mxu0 0
        %599 = vmatmul.mubr.bf16.gmra.mrb[0].mxu0 %v458
        %v600 = vpop.f32.mrb[0].mxu0
        %v601 = vadd.f32 %v492, %v600
        %v602 = vpop.f32.mrb[0].mxu0
        %v603 = vpop.f32.mrb[0].mxu0
        %v604 = vadd.f32 %v492, %v603
        %v605 = vpop.f32.mrb[0].mxu0
        %606 = vmatprep.mubr.bf16.mxu0 0
        %607 = vmatmul.mubr.bf16.gmra.mrb[0].mxu0 %v459
        %v608 = vpop.f32.mrb[0].mxu0
        %v609 = vadd.f32 %v492, %v608
        %v610 = vpop.f32.mrb[0].mxu0
        %v611 = vpop.f32.mrb[0].mxu0
        %v612 = vadd.f32 %v492, %v611
        %v613 = vpop.f32.mrb[0].mxu0
        %614 = vmatprep.mubr.bf16.mxu0 0
        %615 = vmatmul.mubr.bf16.gmra.mrb[0].mxu0 %v460
        %v616 = vpop.f32.mrb[0].mxu0
        %v617 = vadd.f32 %v492, %v616
        %v618 = vpop.f32.mrb[0].mxu0
        %v619 = vpop.f32.mrb[0].mxu0
        %v620 = vadd.f32 %v492, %v619
        %v621 = vpop.f32.mrb[0].mxu0
        %622 = vmatprep.mubr.bf16.mxu0 0
        %623 = vmatmul.mubr.bf16.gmra.mrb[0].mxu0 %v461
        %v624 = vpop.f32.mrb[0].mxu0
        %v625 = vadd.f32 %v492, %v624
        %v626 = vpop.f32.mrb[0].mxu0
        %v627 = vpop.f32.mrb[0].mxu0
        %v628 = vadd.f32 %v492, %v627
        %v629 = vpop.f32.mrb[0].mxu0
        %630 = vmatprep.mubr.bf16.mxu0 0
        %631 = vmatmul.mubr.bf16.gmra.mrb[0].mxu0 %v462
        %v632 = vpop.f32.mrb[0].mxu0
        %v633 = vadd.f32 %v492, %v632
        %v634 = vpop.f32.mrb[0].mxu0
        %v635 = vpop.f32.mrb[0].mxu0
        %v636 = vadd.f32 %v492, %v635
        %v637 = vpop.f32.mrb[0].mxu0
        %638 = vmatprep.mubr.bf16.mxu0 0
        %639 = vmatmul.mubr.bf16.gmra.mrb[0].mxu0 %v463
        %v640 = vpop.f32.mrb[0].mxu0
        %v641 = vadd.f32 %v492, %v640
        %v642 = vpop.f32.mrb[0].mxu0
        %v643 = vpop.f32.mrb[0].mxu0
        %v644 = vadd.f32 %v492, %v643
        %v645 = vpop.f32.mrb[0].mxu0
        %646 = vmatprep.mubr.bf16.mxu0 0
        %647 = vmatmul.mubr.bf16.gmra.mrb[0].mxu0 %v464
        %v648 = vpop.f32.mrb[0].mxu0
        %v649 = vadd.f32 %v492, %v648
        %v650 = vpop.f32.mrb[0].mxu0
        %v651 = vpop.f32.mrb[0].mxu0
        %v652 = vadd.f32 %v492, %v651
        %v653 = vpop.f32.mrb[0].mxu0
        %654 = vmatprep.mubr.bf16.mxu0 0
        %655 = vmatmul.mubr.bf16.gmra.mrb[0].mxu0 %v465
        %v656 = vpop.f32.mrb[0].mxu0
        %v657 = vadd.f32 %v492, %v656
        %v658 = vpop.f32.mrb[0].mxu0
        %v659 = vpop.f32.mrb[0].mxu0
        %v660 = vadd.f32 %v492, %v659
        %v661 = vpop.f32.mrb[0].mxu0
        %662 = vmatprep.mubr.bf16.mxu0 0
        %663 = vmatmul.mubr.bf16.gmra.mrb[0].mxu0 %v466
        %v664 = vpop.f32.mrb[0].mxu0
        %v665 = vadd.f32 %v492, %v664
        %v666 = vpop.f32.mrb[0].mxu0
        %v667 = vpop.f32.mrb[0].mxu0
        %v668 = vadd.f32 %v492, %v667
        %v669 = vpop.f32.mrb[0].mxu0
        %670 = vmatprep.mubr.bf16.mxu0 0
        %671 = vmatmul.mubr.bf16.gmra.mrb[0].mxu0 %v467
        %v672 = vpop.f32.mrb[0].mxu0
        %v673 = vadd.f32 %v492, %v672
        %v674 = vpop.f32.mrb[0].mxu0
        %v675 = vpop.f32.mrb[0].mxu0
        %v676 = vadd.f32 %v492, %v675
        %v677 = vpop.f32.mrb[0].mxu0
        %678 = vmatprep.mubr.bf16.mxu0 0
        %679 = vmatmul.mubr.bf16.gmra.mrb[0].mxu0 %v468
        %v680 = vpop.f32.mrb[0].mxu0
        %v681 = vadd.f32 %v492, %v680
        %v682 = vpop.f32.mrb[0].mxu0
        %v683 = vpop.f32.mrb[0].mxu0
        %v684 = vadd.f32 %v492, %v683
        %v685 = vpop.f32.mrb[0].mxu0
        %686 = vmatprep.mubr.bf16.mxu0 0
        %687 = vmatmul.mubr.bf16.gmra.mrb[0].mxu0 %v469
        %v688 = vpop.f32.mrb[0].mxu0
        %v689 = vadd.f32 %v492, %v688
        %v690 = vpop.f32.mrb[0].mxu0
        %v691 = vpop.f32.mrb[0].mxu0
        %v692 = vadd.f32 %v492, %v691
        %v693 = vpop.f32.mrb[0].mxu0
        %694 = vmatprep.mubr.bf16.mxu0 0
        %695 = vmatmul.mubr.bf16.gmra.mrb[0].mxu0 %v470
        %v696 = vpop.f32.mrb[0].mxu0
        %v697 = vadd.f32 %v492, %v696
        %v698 = vpop.f32.mrb[0].mxu0
        %v699 = vpop.f32.mrb[0].mxu0
        %v700 = vadd.f32 %v492, %v699
        %v701 = vpop.f32.mrb[0].mxu0
        %702 = vdwg.mxu0
        %v703 = vmax.f32 %v577, 0.0
        %v704 = vmax.f32 %v580, 0.0
        %v705 = vmax.f32 %v585, 0.0
        %v706 = vmax.f32 %v588, 0.0
        %v707 = vmax.f32 %v593, 0.0
        %v708 = vmax.f32 %v596, 0.0
        %v709 = vmax.f32 %v601, 0.0
        %v710 = vmax.f32 %v604, 0.0
        %v711 = vmax.f32 %v609, 0.0
        %v712 = vmax.f32 %v612, 0.0
        %v713 = vmax.f32 %v617, 0.0
        %v714 = vmax.f32 %v620, 0.0
        %v715 = vmax.f32 %v625, 0.0
        %v716 = vmax.f32 %v628, 0.0
        %v717 = vmax.f32 %v633, 0.0
        %v718 = vmax.f32 %v636, 0.0
        %v719 = vmax.f32 %v641, 0.0
        %v720 = vmax.f32 %v644, 0.0
        %v721 = vmax.f32 %v649, 0.0
        %v722 = vmax.f32 %v652, 0.0
        %v723 = vmax.f32 %v657, 0.0
        %v724 = vmax.f32 %v660, 0.0
        %v725 = vmax.f32 %v665, 0.0
        %v726 = vmax.f32 %v668, 0.0
        %v727 = vmax.f32 %v673, 0.0
        %v728 = vmax.f32 %v676, 0.0
        %v729 = vmax.f32 %v681, 0.0
        %v730 = vmax.f32 %v684, 0.0
        %v731 = vmax.f32 %v689, 0.0
        %v732 = vmax.f32 %v692, 0.0
        %v733 = vmax.f32 %v697, 0.0
        %v734 = vmax.f32 %v700, 0.0
        %v735 = vpack.c.bf16 %v704, %v703
        %v736 = vpack.c.bf16 %v706, %v705
        %v737 = vpack.c.bf16 %v708, %v707
        %v738 = vpack.c.bf16 %v710, %v709
        %v739 = vpack.c.bf16 %v712, %v711
        %v740 = vpack.c.bf16 %v714, %v713
        %v741 = vpack.c.bf16 %v716, %v715
        %v742 = vpack.c.bf16 %v718, %v717
        %v743 = vpack.c.bf16 %v720, %v719
        %v744 = vpack.c.bf16 %v722, %v721
        %v745 = vpack.c.bf16 %v724, %v723
        %v746 = vpack.c.bf16 %v726, %v725
        %v747 = vpack.c.bf16 %v728, %v727
        %v748 = vpack.c.bf16 %v730, %v729
        %v749 = vpack.c.bf16 %v732, %v731
        %v750 = vpack.c.bf16 %v734, %v733
        %v751 = vld [vmem:[%s5] sm:$0xf]
        %v752 = vld [vmem:[%s5 + $0x4] sm:$0xf]
        %v753 = vld [vmem:[%s5 + $0x8] sm:$0xf]
        %v754 = vld [vmem:[%s5 + $0xc] sm:$0xf]
        %v755 = vld [vmem:[%s6] sm:$0x1]
        %v757 = vlaneseq
        %v758 = vshrl.u32 %v757, 7
        %v759 = vsub.s32 0, %v758
        %v760 = vrot.slane %v755, %v759
        %v766 = vunpack.c.l.b16 %v751
        %v767 = vunpack.c.l.b16 %v752
        %v768 = vunpack.c.l.b16 %v753
        %v769 = vunpack.c.l.b16 %v754
        %v770 = vpack.c.b16 %v767, %v766
        %v771 = vpack.c.b16 %v769, %v768
        %vm774 = vcmask 261120
        %v776 = vsel %vm774, %v735, 0
        %v779 = vsel %vm774, %v736, 0
        %v782 = vsel %vm774, %v737, 0
        %v785 = vsel %vm774, %v738, 0
        %v788 = vsel %vm774, %v739, 0
        %v791 = vsel %vm774, %v740, 0
        %v794 = vsel %vm774, %v741, 0
        %v797 = vsel %vm774, %v742, 0
        %v800 = vsel %vm774, %v743, 0
        %v803 = vsel %vm774, %v744, 0
        %v806 = vsel %vm774, %v745, 0
        %v809 = vsel %vm774, %v746, 0
        %v812 = vsel %vm774, %v747, 0
        %v815 = vsel %vm774, %v748, 0
        %v818 = vsel %vm774, %v749, 0
        %v821 = vsel %vm774, %v750, 0
        %823 = vmatprep.subr.bf16.mxu0 0
        %824 = vmatpush1.bf16.msra.mxu0 %v770
        %825 = vmatprep.subr.bf16.mxu0 0
        %826 = vmatpush1.bf16.msra.mxu0 %v771
        %827 = vmatprep.subr.bf16.mxu0 0
        %828 = vmatpush1.bf16.msra.mxu0 0
        %829 = vmatprep.subr.bf16.mxu0 0
        %830 = vmatpush1.bf16.msra.mxu0 0
        %831 = vmatprep.subr.bf16.mxu0 0
        %832 = vmatpush1.bf16.msra.mxu0 0
        %833 = vmatprep.subr.bf16.mxu0 0
        %834 = vmatpush1.bf16.msra.mxu0 0
        %835 = vmatprep.subr.bf16.mxu0 0
        %836 = vmatpush1.bf16.msra.mxu0 0
        %837 = vmatprep.subr.bf16.mxu0 0
        %838 = vmatpush1.bf16.msra.mxu0 0
        %839 = vmatprep.subr.bf16.mxu0 0
        %840 = vmatpush1.bf16.msra.mxu0 0
        %841 = vmatprep.subr.bf16.mxu0 0
        %842 = vmatpush1.bf16.msra.mxu0 0
        %843 = vmatprep.subr.bf16.mxu0 0
        %844 = vmatpush1.bf16.msra.mxu0 0
        %845 = vmatprep.subr.bf16.mxu0 0
        %846 = vmatpush1.bf16.msra.mxu0 0
        %847 = vmatprep.subr.bf16.mxu0 0
        %848 = vmatpush1.bf16.msra.mxu0 0
        %849 = vmatprep.subr.bf16.mxu0 0
        %850 = vmatpush1.bf16.msra.mxu0 0
        %851 = vmatprep.subr.bf16.mxu0 0
        %852 = vmatpush1.bf16.msra.mxu0 0
        %853 = vmatprep.subr.bf16.mxu0 0
        %854 = vmatpush1.bf16.msra.mxu0 0
        %855 = vmatprep.mubr.bf16.mxu0 0
        %856 = vmatmul.mubr.bf16.gmra.mrb[0].mxu0 %v776
        %v857 = vpop.f32.mrb[0].mxu0
        %v858 = vadd.f32 %v760, %v857
        %v859 = vpop.f32.mrb[0].mxu0
        %v860 = vpop.f32.mrb[0].mxu0
        %v861 = vadd.f32 %v760, %v860
        %v862 = vpop.f32.mrb[0].mxu0
        %863 = vmatprep.mubr.bf16.mxu0 0
        %864 = vmatmul.mubr.bf16.gmra.mrb[0].mxu0 %v779
        %v865 = vpop.f32.mrb[0].mxu0
        %v866 = vadd.f32 %v760, %v865
        %v867 = vpop.f32.mrb[0].mxu0
        %v868 = vpop.f32.mrb[0].mxu0
        %v869 = vadd.f32 %v760, %v868
        %v870 = vpop.f32.mrb[0].mxu0
        %871 = vmatprep.mubr.bf16.mxu0 0
        %872 = vmatmul.mubr.bf16.gmra.mrb[0].mxu0 %v782
        %v873 = vpop.f32.mrb[0].mxu0
        %v874 = vadd.f32 %v760, %v873
        %v875 = vpop.f32.mrb[0].mxu0
        %v876 = vpop.f32.mrb[0].mxu0
        %v877 = vadd.f32 %v760, %v876
        %v878 = vpop.f32.mrb[0].mxu0
        %879 = vmatprep.mubr.bf16.mxu0 0
        %880 = vmatmul.mubr.bf16.gmra.mrb[0].mxu0 %v785
        %v881 = vpop.f32.mrb[0].mxu0
        %v882 = vadd.f32 %v760, %v881
        %v883 = vpop.f32.mrb[0].mxu0
        %v884 = vpop.f32.mrb[0].mxu0
        %v885 = vadd.f32 %v760, %v884
        %v886 = vpop.f32.mrb[0].mxu0
        %887 = vmatprep.mubr.bf16.mxu0 0
        %888 = vmatmul.mubr.bf16.gmra.mrb[0].mxu0 %v788
        %v889 = vpop.f32.mrb[0].mxu0
        %v890 = vadd.f32 %v760, %v889
        %v891 = vpop.f32.mrb[0].mxu0
        %v892 = vpop.f32.mrb[0].mxu0
        %v893 = vadd.f32 %v760, %v892
        %v894 = vpop.f32.mrb[0].mxu0
        %895 = vmatprep.mubr.bf16.mxu0 0
        %896 = vmatmul.mubr.bf16.gmra.mrb[0].mxu0 %v791
        %v897 = vpop.f32.mrb[0].mxu0
        %v898 = vadd.f32 %v760, %v897
        %v899 = vpop.f32.mrb[0].mxu0
        %v900 = vpop.f32.mrb[0].mxu0
        %v901 = vadd.f32 %v760, %v900
        %v902 = vpop.f32.mrb[0].mxu0
        %903 = vmatprep.mubr.bf16.mxu0 0
        %904 = vmatmul.mubr.bf16.gmra.mrb[0].mxu0 %v794
        %v905 = vpop.f32.mrb[0].mxu0
        %v906 = vadd.f32 %v760, %v905
        %v907 = vpop.f32.mrb[0].mxu0
        %v908 = vpop.f32.mrb[0].mxu0
        %v909 = vadd.f32 %v760, %v908
        %v910 = vpop.f32.mrb[0].mxu0
        %911 = vmatprep.mubr.bf16.mxu0 0
        %912 = vmatmul.mubr.bf16.gmra.mrb[0].mxu0 %v797
        %v913 = vpop.f32.mrb[0].mxu0
        %v914 = vadd.f32 %v760, %v913
        %v915 = vpop.f32.mrb[0].mxu0
        %v916 = vpop.f32.mrb[0].mxu0
        %v917 = vadd.f32 %v760, %v916
        %v918 = vpop.f32.mrb[0].mxu0
        %919 = vmatprep.mubr.bf16.mxu0 0
        %920 = vmatmul.mubr.bf16.gmra.mrb[0].mxu0 %v800
        %v921 = vpop.f32.mrb[0].mxu0
        %v922 = vadd.f32 %v760, %v921
        %v923 = vpop.f32.mrb[0].mxu0
        %v924 = vpop.f32.mrb[0].mxu0
        %v925 = vadd.f32 %v760, %v924
        %v926 = vpop.f32.mrb[0].mxu0
        %927 = vmatprep.mubr.bf16.mxu0 0
        %928 = vmatmul.mubr.bf16.gmra.mrb[0].mxu0 %v803
        %v929 = vpop.f32.mrb[0].mxu0
        %v930 = vadd.f32 %v760, %v929
        %v931 = vpop.f32.mrb[0].mxu0
        %v932 = vpop.f32.mrb[0].mxu0
        %v933 = vadd.f32 %v760, %v932
        %v934 = vpop.f32.mrb[0].mxu0
        %935 = vmatprep.mubr.bf16.mxu0 0
        %936 = vmatmul.mubr.bf16.gmra.mrb[0].mxu0 %v806
        %v937 = vpop.f32.mrb[0].mxu0
        %v938 = vadd.f32 %v760, %v937
        %v939 = vpop.f32.mrb[0].mxu0
        %v940 = vpop.f32.mrb[0].mxu0
        %v941 = vadd.f32 %v760, %v940
        %v942 = vpop.f32.mrb[0].mxu0
        %943 = vmatprep.mubr.bf16.mxu0 0
        %944 = vmatmul.mubr.bf16.gmra.mrb[0].mxu0 %v809
        %v945 = vpop.f32.mrb[0].mxu0
        %v946 = vadd.f32 %v760, %v945
        %v947 = vpop.f32.mrb[0].mxu0
        %v948 = vpop.f32.mrb[0].mxu0
        %v949 = vadd.f32 %v760, %v948
        %v950 = vpop.f32.mrb[0].mxu0
        %951 = vmatprep.mubr.bf16.mxu0 0
        %952 = vmatmul.mubr.bf16.gmra.mrb[0].mxu0 %v812
        %v953 = vpop.f32.mrb[0].mxu0
        %v954 = vadd.f32 %v760, %v953
        %v955 = vpop.f32.mrb[0].mxu0
        %v956 = vpop.f32.mrb[0].mxu0
        %v957 = vadd.f32 %v760, %v956
        %v958 = vpop.f32.mrb[0].mxu0
        %959 = vmatprep.mubr.bf16.mxu0 0
        %960 = vmatmul.mubr.bf16.gmra.mrb[0].mxu0 %v815
        %v961 = vpop.f32.mrb[0].mxu0
        %v962 = vadd.f32 %v760, %v961
        %v963 = vpop.f32.mrb[0].mxu0
        %v964 = vpop.f32.mrb[0].mxu0
        %v965 = vadd.f32 %v760, %v964
        %v966 = vpop.f32.mrb[0].mxu0
        %967 = vmatprep.mubr.bf16.mxu0 0
        %968 = vmatmul.mubr.bf16.gmra.mrb[0].mxu0 %v818
        %v969 = vpop.f32.mrb[0].mxu0
        %v970 = vadd.f32 %v760, %v969
        %v971 = vpop.f32.mrb[0].mxu0
        %v972 = vpop.f32.mrb[0].mxu0
        %v973 = vadd.f32 %v760, %v972
        %v974 = vpop.f32.mrb[0].mxu0
        %975 = vmatprep.mubr.bf16.mxu0 0
        %976 = vmatmul.mubr.bf16.gmra.mrb[0].mxu0 %v821
        %v977 = vpop.f32.mrb[0].mxu0
        %v978 = vadd.f32 %v760, %v977
        %v979 = vpop.f32.mrb[0].mxu0
        %v980 = vpop.f32.mrb[0].mxu0
        %v981 = vadd.f32 %v760, %v980
        %v982 = vpop.f32.mrb[0].mxu0
        %983 = vdwg.mxu0
        %v984 = vld [vmem:[%s356] sm:$0x1]
        %v986 = vlaneseq
        %v987 = vshrl.u32 %v986, 7
        %v988 = vsub.s32 0, %v987
        %v989 = vrot.slane %v984, %v988
        %v991 = vadd.f32 %v858, %v989
        %v992 = vadd.f32 %v861, %v989
        %v993 = vadd.f32 %v866, %v989
        %v994 = vadd.f32 %v869, %v989
        %v995 = vadd.f32 %v874, %v989
        %v996 = vadd.f32 %v877, %v989
        %v997 = vadd.f32 %v882, %v989
        %v998 = vadd.f32 %v885, %v989
        %v999 = vadd.f32 %v890, %v989
        %v1000 = vadd.f32 %v893, %v989
        %v1001 = vadd.f32 %v898, %v989
        %v1002 = vadd.f32 %v901, %v989
        %v1003 = vadd.f32 %v906, %v989
        %v1004 = vadd.f32 %v909, %v989
        %v1005 = vadd.f32 %v914, %v989
        %v1006 = vadd.f32 %v917, %v989
        %v1007 = vadd.f32 %v922, %v989
        %v1008 = vadd.f32 %v925, %v989
        %v1009 = vadd.f32 %v930, %v989
        %v1010 = vadd.f32 %v933, %v989
        %v1011 = vadd.f32 %v938, %v989
        %v1012 = vadd.f32 %v941, %v989
        %v1013 = vadd.f32 %v946, %v989
        %v1014 = vadd.f32 %v949, %v989
        %v1015 = vadd.f32 %v954, %v989
        %v1016 = vadd.f32 %v957, %v989
        %v1017 = vadd.f32 %v962, %v989
        %v1018 = vadd.f32 %v965, %v989
        %v1019 = vadd.f32 %v970, %v989
        %v1020 = vadd.f32 %v973, %v989
        %v1021 = vadd.f32 %v978, %v989
        %v1022 = vadd.f32 %v981, %v989
        %v1023 = vxor.u32 %v991, 2147483648
        %v1024 = vxor.u32 %v992, 2147483648
        %v1025 = vxor.u32 %v993, 2147483648
        %v1026 = vxor.u32 %v994, 2147483648
        %v1027 = vxor.u32 %v995, 2147483648
        %v1028 = vxor.u32 %v996, 2147483648
        %v1029 = vxor.u32 %v997, 2147483648
        %v1030 = vxor.u32 %v998, 2147483648
        %v1031 = vxor.u32 %v999, 2147483648
        %v1032 = vxor.u32 %v1000, 2147483648
        %v1033 = vxor.u32 %v1001, 2147483648
        %v1034 = vxor.u32 %v1002, 2147483648
        %v1035 = vxor.u32 %v1003, 2147483648
        %v1036 = vxor.u32 %v1004, 2147483648
        %v1037 = vxor.u32 %v1005, 2147483648
        %v1038 = vxor.u32 %v1006, 2147483648
        %v1039 = vxor.u32 %v1007, 2147483648
        %v1040 = vxor.u32 %v1008, 2147483648
        %v1041 = vxor.u32 %v1009, 2147483648
        %v1042 = vxor.u32 %v1010, 2147483648
        %v1043 = vxor.u32 %v1011, 2147483648
        %v1044 = vxor.u32 %v1012, 2147483648
        %v1045 = vxor.u32 %v1013, 2147483648
        %v1046 = vxor.u32 %v1014, 2147483648
        %v1047 = vxor.u32 %v1015, 2147483648
        %v1048 = vxor.u32 %v1016, 2147483648
        %v1049 = vxor.u32 %v1017, 2147483648
        %v1050 = vxor.u32 %v1018, 2147483648
        %v1051 = vxor.u32 %v1019, 2147483648
        %v1052 = vxor.u32 %v1020, 2147483648
        %v1053 = vxor.u32 %v1021, 2147483648
        %v1054 = vxor.u32 %v1022, 2147483648
        %v1055 = vmul.f32 %v1023, 1.442695
        %v1056 = vpow.pop %v1055
        %v1057 = vmul.f32 %v1024, 1.442695
        %v1058 = vpow.pop %v1057
        %v1059 = vmul.f32 %v1025, 1.442695
        %v1060 = vpow.pop %v1059
        %v1061 = vmul.f32 %v1026, 1.442695
        %v1062 = vpow.pop %v1061
        %v1063 = vmul.f32 %v1027, 1.442695
        %v1064 = vpow.pop %v1063
        %v1065 = vmul.f32 %v1028, 1.442695
        %v1066 = vpow.pop %v1065
        %v1067 = vmul.f32 %v1029, 1.442695
        %v1068 = vpow.pop %v1067
        %v1069 = vmul.f32 %v1030, 1.442695
        %v1070 = vpow.pop %v1069
        %v1071 = vmul.f32 %v1031, 1.442695
        %v1072 = vpow.pop %v1071
        %v1073 = vmul.f32 %v1032, 1.442695
        %v1074 = vpow.pop %v1073
        %v1075 = vmul.f32 %v1033, 1.442695
        %v1076 = vpow.pop %v1075
        %v1077 = vmul.f32 %v1034, 1.442695
        %v1078 = vpow.pop %v1077
        %v1079 = vmul.f32 %v1035, 1.442695
        %v1080 = vpow.pop %v1079
        %v1081 = vmul.f32 %v1036, 1.442695
        %v1082 = vpow.pop %v1081
        %v1083 = vmul.f32 %v1037, 1.442695
        %v1084 = vpow.pop %v1083
        %v1085 = vmul.f32 %v1038, 1.442695
        %v1086 = vpow.pop %v1085
        %v1087 = vmul.f32 %v1039, 1.442695
        %v1088 = vpow.pop %v1087
        %v1089 = vmul.f32 %v1040, 1.442695
        %v1090 = vpow.pop %v1089
        %v1091 = vmul.f32 %v1041, 1.442695
        %v1092 = vpow.pop %v1091
        %v1093 = vmul.f32 %v1042, 1.442695
        %v1094 = vpow.pop %v1093
        %v1095 = vmul.f32 %v1043, 1.442695
        %v1096 = vpow.pop %v1095
        %v1097 = vmul.f32 %v1044, 1.442695
        %v1098 = vpow.pop %v1097
        %v1099 = vmul.f32 %v1045, 1.442695
        %v1100 = vpow.pop %v1099
        %v1101 = vmul.f32 %v1046, 1.442695
        %v1102 = vpow.pop %v1101
        %v1103 = vmul.f32 %v1047, 1.442695
        %v1104 = vpow.pop %v1103
        %v1105 = vmul.f32 %v1048, 1.442695
        %v1106 = vpow.pop %v1105
        %v1107 = vmul.f32 %v1049, 1.442695
        %v1108 = vpow.pop %v1107
        %v1109 = vmul.f32 %v1050, 1.442695
        %v1110 = vpow.pop %v1109
        %v1111 = vmul.f32 %v1051, 1.442695
        %v1112 = vpow.pop %v1111
        %v1113 = vmul.f32 %v1052, 1.442695
        %v1114 = vpow.pop %v1113
        %v1115 = vmul.f32 %v1053, 1.442695
        %v1116 = vpow.pop %v1115
        %v1117 = vmul.f32 %v1054, 1.442695
        %v1118 = vpow.pop %v1117
        %v1119 = vadd.f32 %v1056, 1.0
        %v1120 = vadd.f32 %v1058, 1.0
        %v1121 = vadd.f32 %v1060, 1.0
        %v1122 = vadd.f32 %v1062, 1.0
        %v1123 = vadd.f32 %v1064, 1.0
        %v1124 = vadd.f32 %v1066, 1.0
        %v1125 = vadd.f32 %v1068, 1.0
        %v1126 = vadd.f32 %v1070, 1.0
        %v1127 = vadd.f32 %v1072, 1.0
        %v1128 = vadd.f32 %v1074, 1.0
        %v1129 = vadd.f32 %v1076, 1.0
        %v1130 = vadd.f32 %v1078, 1.0
        %v1131 = vadd.f32 %v1080, 1.0
        %v1132 = vadd.f32 %v1082, 1.0
        %v1133 = vadd.f32 %v1084, 1.0
        %v1134 = vadd.f32 %v1086, 1.0
        %v1135 = vadd.f32 %v1088, 1.0
        %v1136 = vadd.f32 %v1090, 1.0
        %v1137 = vadd.f32 %v1092, 1.0
        %v1138 = vadd.f32 %v1094, 1.0
        %v1139 = vadd.f32 %v1096, 1.0
        %v1140 = vadd.f32 %v1098, 1.0
        %v1141 = vadd.f32 %v1100, 1.0
        %v1142 = vadd.f32 %v1102, 1.0
        %v1143 = vadd.f32 %v1104, 1.0
        %v1144 = vadd.f32 %v1106, 1.0
        %v1145 = vadd.f32 %v1108, 1.0
        %v1146 = vadd.f32 %v1110, 1.0
        %v1147 = vadd.f32 %v1112, 1.0
        %v1148 = vadd.f32 %v1114, 1.0
        %v1149 = vadd.f32 %v1116, 1.0
        %v1150 = vadd.f32 %v1118, 1.0
        %v1151 = vrcp.pop %v1119
        %v1152 = vmul.f32 1.0, %v1151
        %v1153 = vrcp.pop %v1120
        %v1154 = vmul.f32 1.0, %v1153
        %v1155 = vrcp.pop %v1121
        %v1156 = vmul.f32 1.0, %v1155
        %v1157 = vrcp.pop %v1122
        %v1158 = vmul.f32 1.0, %v1157
        %v1159 = vrcp.pop %v1123
        %v1160 = vmul.f32 1.0, %v1159
        %v1161 = vrcp.pop %v1124
        %v1162 = vmul.f32 1.0, %v1161
        %v1163 = vrcp.pop %v1125
        %v1164 = vmul.f32 1.0, %v1163
        %v1165 = vrcp.pop %v1126
        %v1166 = vmul.f32 1.0, %v1165
        %v1167 = vrcp.pop %v1127
        %v1168 = vmul.f32 1.0, %v1167
        %v1169 = vrcp.pop %v1128
        %v1170 = vmul.f32 1.0, %v1169
        %v1171 = vrcp.pop %v1129
        %v1172 = vmul.f32 1.0, %v1171
        %v1173 = vrcp.pop %v1130
        %v1174 = vmul.f32 1.0, %v1173
        %v1175 = vrcp.pop %v1131
        %v1176 = vmul.f32 1.0, %v1175
        %v1177 = vrcp.pop %v1132
        %v1178 = vmul.f32 1.0, %v1177
        %v1179 = vrcp.pop %v1133
        %v1180 = vmul.f32 1.0, %v1179
        %v1181 = vrcp.pop %v1134
        %v1182 = vmul.f32 1.0, %v1181
        %v1183 = vrcp.pop %v1135
        %v1184 = vmul.f32 1.0, %v1183
        %v1185 = vrcp.pop %v1136
        %v1186 = vmul.f32 1.0, %v1185
        %v1187 = vrcp.pop %v1137
        %v1188 = vmul.f32 1.0, %v1187
        %v1189 = vrcp.pop %v1138
        %v1190 = vmul.f32 1.0, %v1189
        %v1191 = vrcp.pop %v1139
        %v1192 = vmul.f32 1.0, %v1191
        %v1193 = vrcp.pop %v1140
        %v1194 = vmul.f32 1.0, %v1193
        %v1195 = vrcp.pop %v1141
        %v1196 = vmul.f32 1.0, %v1195
        %v1197 = vrcp.pop %v1142
        %v1198 = vmul.f32 1.0, %v1197
        %v1199 = vrcp.pop %v1143
        %v1200 = vmul.f32 1.0, %v1199
        %v1201 = vrcp.pop %v1144
        %v1202 = vmul.f32 1.0, %v1201
        %v1203 = vrcp.pop %v1145
        %v1204 = vmul.f32 1.0, %v1203
        %v1205 = vrcp.pop %v1146
        %v1206 = vmul.f32 1.0, %v1205
        %v1207 = vrcp.pop %v1147
        %v1208 = vmul.f32 1.0, %v1207
        %v1209 = vrcp.pop %v1148
        %v1210 = vmul.f32 1.0, %v1209
        %v1211 = vrcp.pop %v1149
        %v1212 = vmul.f32 1.0, %v1211
        %v1213 = vrcp.pop %v1150
        %v1214 = vmul.f32 1.0, %v1213
        %v1215 = vmul.f32 %v1152, %v423
        %v1216 = vmul.f32 %v1154, %v424
        %v1217 = vmul.f32 %v1156, %v425
        %v1218 = vmul.f32 %v1158, %v426
        %v1219 = vmul.f32 %v1160, %v427
        %v1220 = vmul.f32 %v1162, %v428
        %v1221 = vmul.f32 %v1164, %v429
        %v1222 = vmul.f32 %v1166, %v430
        %v1223 = vmul.f32 %v1168, %v431
        %v1224 = vmul.f32 %v1170, %v432
        %v1225 = vmul.f32 %v1172, %v433
        %v1226 = vmul.f32 %v1174, %v434
        %v1227 = vmul.f32 %v1176, %v435
        %v1228 = vmul.f32 %v1178, %v436
        %v1229 = vmul.f32 %v1180, %v437
        %v1230 = vmul.f32 %v1182, %v438
        %v1231 = vmul.f32 %v1184, %v439
        %v1232 = vmul.f32 %v1186, %v440
        %v1233 = vmul.f32 %v1188, %v441
        %v1234 = vmul.f32 %v1190, %v442
        %v1235 = vmul.f32 %v1192, %v443
        %v1236 = vmul.f32 %v1194, %v444
        %v1237 = vmul.f32 %v1196, %v445
        %v1238 = vmul.f32 %v1198, %v446
        %v1239 = vmul.f32 %v1200, %v447
        %v1240 = vmul.f32 %v1202, %v448
        %v1241 = vmul.f32 %v1204, %v449
        %v1242 = vmul.f32 %v1206, %v450
        %v1243 = vmul.f32 %v1208, %v451
        %v1244 = vmul.f32 %v1210, %v452
        %v1245 = vmul.f32 %v1212, %v453
        %v1246 = vmul.f32 %v1214, %v454
        %v1247 = vsub.f32 %v359, %v391
        %v1248 = vsub.f32 %v360, %v392
        %v1249 = vsub.f32 %v361, %v393
        %v1250 = vsub.f32 %v362, %v394
        %v1251 = vsub.f32 %v363, %v395
        %v1252 = vsub.f32 %v364, %v396
        %v1253 = vsub.f32 %v365, %v397
        %v1254 = vsub.f32 %v366, %v398
        %v1255 = vsub.f32 %v367, %v399
        %v1256 = vsub.f32 %v368, %v400
        %v1257 = vsub.f32 %v369, %v401
        %v1258 = vsub.f32 %v370, %v402
        %v1259 = vsub.f32 %v371, %v403
        %v1260 = vsub.f32 %v372, %v404
        %v1261 = vsub.f32 %v373, %v405
        %v1262 = vsub.f32 %v374, %v406
        %v1263 = vsub.f32 %v375, %v407
        %v1264 = vsub.f32 %v376, %v408
        %v1265 = vsub.f32 %v377, %v409
        %v1266 = vsub.f32 %v378, %v410
        %v1267 = vsub.f32 %v379, %v411
        %v1268 = vsub.f32 %v380, %v412
        %v1269 = vsub.f32 %v381, %v413
        %v1270 = vsub.f32 %v382, %v414
        %v1271 = vsub.f32 %v383, %v415
        %v1272 = vsub.f32 %v384, %v416
        %v1273 = vsub.f32 %v385, %v417
        %v1274 = vsub.f32 %v386, %v418
        %v1275 = vsub.f32 %v387, %v419
        %v1276 = vsub.f32 %v388, %v420
        %v1277 = vsub.f32 %v389, %v421
        %v1278 = vsub.f32 %v390, %v422
        %v1279 = vmul.f32 %v1215, %v1247
        %v1280 = vmul.f32 %v1216, %v1248
        %v1281 = vmul.f32 %v1217, %v1249
        %v1282 = vmul.f32 %v1218, %v1250
        %v1283 = vmul.f32 %v1219, %v1251
        %v1284 = vmul.f32 %v1220, %v1252
        %v1285 = vmul.f32 %v1221, %v1253
        %v1286 = vmul.f32 %v1222, %v1254
        %v1287 = vmul.f32 %v1223, %v1255
        %v1288 = vmul.f32 %v1224, %v1256
        %v1289 = vmul.f32 %v1225, %v1257
        %v1290 = vmul.f32 %v1226, %v1258
        %v1291 = vmul.f32 %v1227, %v1259
        %v1292 = vmul.f32 %v1228, %v1260
        %v1293 = vmul.f32 %v1229, %v1261
        %v1294 = vmul.f32 %v1230, %v1262
        %v1295 = vmul.f32 %v1231, %v1263
        %v1296 = vmul.f32 %v1232, %v1264
        %v1297 = vmul.f32 %v1233, %v1265
        %v1298 = vmul.f32 %v1234, %v1266
        %v1299 = vmul.f32 %v1235, %v1267
        %v1300 = vmul.f32 %v1236, %v1268
        %v1301 = vmul.f32 %v1237, %v1269
        %v1302 = vmul.f32 %v1238, %v1270
        %v1303 = vmul.f32 %v1239, %v1271
        %v1304 = vmul.f32 %v1240, %v1272
        %v1305 = vmul.f32 %v1241, %v1273
        %v1306 = vmul.f32 %v1242, %v1274
        %v1307 = vmul.f32 %v1243, %v1275
        %v1308 = vmul.f32 %v1244, %v1276
        %v1309 = vmul.f32 %v1245, %v1277
        %v1310 = vmul.f32 %v1246, %v1278
        %v1311 = vadd.f32 %v391, %v1279
        %v1312 = vadd.f32 %v392, %v1280
        %v1313 = vadd.f32 %v393, %v1281
        %v1314 = vadd.f32 %v394, %v1282
        %v1315 = vadd.f32 %v395, %v1283
        %v1316 = vadd.f32 %v396, %v1284
        %v1317 = vadd.f32 %v397, %v1285
        %v1318 = vadd.f32 %v398, %v1286
        %v1319 = vadd.f32 %v399, %v1287
        %v1320 = vadd.f32 %v400, %v1288
        %v1321 = vadd.f32 %v401, %v1289
        %v1322 = vadd.f32 %v402, %v1290
        %v1323 = vadd.f32 %v403, %v1291
        %v1324 = vadd.f32 %v404, %v1292
        %v1325 = vadd.f32 %v405, %v1293
        %v1326 = vadd.f32 %v406, %v1294
        %v1327 = vadd.f32 %v407, %v1295
        %v1328 = vadd.f32 %v408, %v1296
        %v1329 = vadd.f32 %v409, %v1297
        %v1330 = vadd.f32 %v410, %v1298
        %v1331 = vadd.f32 %v411, %v1299
        %v1332 = vadd.f32 %v412, %v1300
        %v1333 = vadd.f32 %v413, %v1301
        %v1334 = vadd.f32 %v414, %v1302
        %v1335 = vadd.f32 %v415, %v1303
        %v1336 = vadd.f32 %v416, %v1304
        %v1337 = vadd.f32 %v417, %v1305
        %v1338 = vadd.f32 %v418, %v1306
        %v1339 = vadd.f32 %v419, %v1307
        %v1340 = vadd.f32 %v420, %v1308
        %v1341 = vadd.f32 %v421, %v1309
        %v1342 = vadd.f32 %v422, %v1310
        %v1343 = vpack.c.bf16 %v1312, %v1311
        %v1344 = vpack.c.bf16 %v1314, %v1313
        %v1345 = vpack.c.bf16 %v1316, %v1315
        %v1346 = vpack.c.bf16 %v1318, %v1317
        %v1347 = vpack.c.bf16 %v1320, %v1319
        %v1348 = vpack.c.bf16 %v1322, %v1321
        %v1349 = vpack.c.bf16 %v1324, %v1323
        %v1350 = vpack.c.bf16 %v1326, %v1325
        %v1351 = vpack.c.bf16 %v1328, %v1327
        %v1352 = vpack.c.bf16 %v1330, %v1329
        %v1353 = vpack.c.bf16 %v1332, %v1331
        %v1354 = vpack.c.bf16 %v1334, %v1333
        %v1355 = vpack.c.bf16 %v1336, %v1335
        %v1356 = vpack.c.bf16 %v1338, %v1337
        %v1357 = vpack.c.bf16 %v1340, %v1339
        %v1358 = vpack.c.bf16 %v1342, %v1341
        %v1375 = vunpack.c.l.b16 %v1343
        %v1376 = vunpack.c.h.b16 %v1343
        %v1377 = vunpack.c.l.b16 %v1344
        %v1378 = vunpack.c.h.b16 %v1344
        %v1379 = vunpack.c.l.b16 %v1345
        %v1380 = vunpack.c.h.b16 %v1345
        %v1381 = vunpack.c.l.b16 %v1346
        %v1382 = vunpack.c.h.b16 %v1346
        %v1383 = vunpack.c.l.b16 %v1347
        %v1384 = vunpack.c.h.b16 %v1347
        %v1385 = vunpack.c.l.b16 %v1348
        %v1386 = vunpack.c.h.b16 %v1348
        %v1387 = vunpack.c.l.b16 %v1349
        %v1388 = vunpack.c.h.b16 %v1349
        %v1389 = vunpack.c.l.b16 %v1350
        %v1390 = vunpack.c.h.b16 %v1350
        %v1391 = vunpack.c.l.b16 %v1351
        %v1392 = vunpack.c.h.b16 %v1351
        %v1393 = vunpack.c.l.b16 %v1352
        %v1394 = vunpack.c.h.b16 %v1352
        %v1395 = vunpack.c.l.b16 %v1353
        %v1396 = vunpack.c.h.b16 %v1353
        %v1397 = vunpack.c.l.b16 %v1354
        %v1398 = vunpack.c.h.b16 %v1354
        %v1399 = vunpack.c.l.b16 %v1355
        %v1400 = vunpack.c.h.b16 %v1355
        %v1401 = vunpack.c.l.b16 %v1356
        %v1402 = vunpack.c.h.b16 %v1356
        %v1403 = vunpack.c.l.b16 %v1357
        %v1404 = vunpack.c.h.b16 %v1357
        %v1405 = vunpack.c.l.b16 %v1358
        %v1406 = vunpack.c.h.b16 %v1358
        %v1407 = vpack.c.b16 %v1375, %v1375
        %v1408 = vpack.c.b16 %v1376, %v1376
        %v1409 = vpack.c.b16 %v1377, %v1377
        %v1410 = vpack.c.b16 %v1378, %v1378
        %v1411 = vpack.c.b16 %v1379, %v1379
        %v1412 = vpack.c.b16 %v1380, %v1380
        %v1413 = vpack.c.b16 %v1381, %v1381
        %v1414 = vpack.c.b16 %v1382, %v1382
        %v1415 = vpack.c.b16 %v1383, %v1383
        %v1416 = vpack.c.b16 %v1384, %v1384
        %v1417 = vpack.c.b16 %v1385, %v1385
        %v1418 = vpack.c.b16 %v1386, %v1386
        %v1419 = vpack.c.b16 %v1387, %v1387
        %v1420 = vpack.c.b16 %v1388, %v1388
        %v1421 = vpack.c.b16 %v1389, %v1389
        %v1422 = vpack.c.b16 %v1390, %v1390
        %v1423 = vpack.c.b16 %v1391, %v1391
        %v1424 = vpack.c.b16 %v1392, %v1392
        %v1425 = vpack.c.b16 %v1393, %v1393
        %v1426 = vpack.c.b16 %v1394, %v1394
        %v1427 = vpack.c.b16 %v1395, %v1395
        %v1428 = vpack.c.b16 %v1396, %v1396
        %v1429 = vpack.c.b16 %v1397, %v1397
        %v1430 = vpack.c.b16 %v1398, %v1398
        %v1431 = vpack.c.b16 %v1399, %v1399
        %v1432 = vpack.c.b16 %v1400, %v1400
        %v1433 = vpack.c.b16 %v1401, %v1401
        %v1434 = vpack.c.b16 %v1402, %v1402
        %v1435 = vpack.c.b16 %v1403, %v1403
        %v1436 = vpack.c.b16 %v1404, %v1404
        %v1437 = vpack.c.b16 %v1405, %v1405
        %v1438 = vpack.c.b16 %v1406, %v1406
        %1471 = vst [vmem:[%s333] sm:$0xf] %v1407
        %1472 = vst [vmem:[%s333 + $0x4] sm:$0xf] %v1408
        %1473 = vst [vmem:[%s333 + $0x8] sm:$0xf] %v1409
        %1474 = vst [vmem:[%s333 + $0xc] sm:$0xf] %v1410
        %1475 = vst [vmem:[%s333 + $0x10] sm:$0xf] %v1411
        %1476 = vst [vmem:[%s333 + $0x14] sm:$0xf] %v1412
        %1477 = vst [vmem:[%s333 + $0x18] sm:$0xf] %v1413
        %1478 = vst [vmem:[%s333 + $0x1c] sm:$0xf] %v1414
        %1479 = vst [vmem:[%s333 + $0x20] sm:$0xf] %v1415
        %1480 = vst [vmem:[%s333 + $0x24] sm:$0xf] %v1416
        %1481 = vst [vmem:[%s333 + $0x28] sm:$0xf] %v1417
        %1482 = vst [vmem:[%s333 + $0x2c] sm:$0xf] %v1418
        %1483 = vst [vmem:[%s333 + $0x30] sm:$0xf] %v1419
        %1484 = vst [vmem:[%s333 + $0x34] sm:$0xf] %v1420
        %1485 = vst [vmem:[%s333 + $0x38] sm:$0xf] %v1421
        %1486 = vst [vmem:[%s333 + $0x3c] sm:$0xf] %v1422
        %1487 = vst [vmem:[%s333 + $0x40] sm:$0xf] %v1423
        %1488 = vst [vmem:[%s333 + $0x44] sm:$0xf] %v1424
        %1489 = vst [vmem:[%s333 + $0x48] sm:$0xf] %v1425
        %1490 = vst [vmem:[%s333 + $0x4c] sm:$0xf] %v1426
        %1491 = vst [vmem:[%s333 + $0x50] sm:$0xf] %v1427
        %1492 = vst [vmem:[%s333 + $0x54] sm:$0xf] %v1428
        %1493 = vst [vmem:[%s333 + $0x58] sm:$0xf] %v1429
        %1494 = vst [vmem:[%s333 + $0x5c] sm:$0xf] %v1430
        %1495 = vst [vmem:[%s333 + $0x60] sm:$0xf] %v1431
        %1496 = vst [vmem:[%s333 + $0x64] sm:$0xf] %v1432
        %1497 = vst [vmem:[%s333 + $0x68] sm:$0xf] %v1433
        %1498 = vst [vmem:[%s333 + $0x6c] sm:$0xf] %v1434
        %1499 = vst [vmem:[%s333 + $0x70] sm:$0xf] %v1435
        %1500 = vst [vmem:[%s333 + $0x74] sm:$0xf] %v1436
        %1501 = vst [vmem:[%s333 + $0x78] sm:$0xf] %v1437
        %1502 = vst [vmem:[%s333 + $0x7c] sm:$0xf] %v1438
        %s1503 = sand.u32 %s209, 1
        %s1504 = scalar_lea.sflag [#allocation3], %s1503
        %s1505 = sand.u32 %s209, 1
        %s1506 = smul.addr %s1505, 128
        %s1507 = scalar_lea.vmem [#allocation2], %s1506
        // Predicated region
        $region49: #{aff_forward.1} parent=47 // pred_check
          %p1508 = pneg %p219
        $region50: #{aff_forward.1} parent=47 // pred_check_branch
          %1510 = sbr.rel (%p1508) target = $region52
        $region51: #{aff_forward.1} parent=47 // pred_region
          %s1511 = smul.u32 32, %s26
          %s1513 = ssub.s32 2048, 2048
          %1514 = vsyncadd %s1504, %s1513
          %s1515 = smul.addr %s25, 32
          %s1516 = sadd.s32 %s1511, %s1515
          %s1517 = smul.addr %s1516, 64
          %s1518 = scalar_lea.hbm %s7, %s1517
          %s1519 = sshll.u32 %s1507, 4
          %s1520 = int_to_ptr.vmem [resolvable:$true] %s1519
          %1525 = dma.vmem_to_hbm [thread:$0]  %s1520, 2048, %s1518, %s1504, 64, 64, 4
        $region52: #{aff_forward.1} parent=47 // pred_fallthru
          _
      $region48: #{aff_forward.1} parent=5 // pred_fallthru
        _
      %p1526 = scmp.le.s32.totalorder 2, %s16
      // Predicated region
      $region53: #{aff_forward.1} parent=5 // pred_check
        %p1527 = pneg %p1526
      $region54: #{aff_forward.1} parent=5 // pred_check_branch
        %1529 = sbr.rel (%p1527) target = $region56
      $region55: #{aff_forward.1} parent=5 // pred_region
        %s1530 = ssub.s32 %s16, 2
        // Predicated region
        $region57: #{aff_forward.1} parent=55 // pred_check
          %p1531 = pneg %p225
        $region58: #{aff_forward.1} parent=55 // pred_check_branch
          %1533 = sbr.rel (%p1531) target = $region60
        $region59: #{aff_forward.1} parent=55 // pred_region
          %s1534 = sand.u32 %s210, 1
          %s1535 = scalar_lea.sflag [#allocation3], %s1534
          %s1536 = sand.u32 %s210, 1
          %s1537 = smul.addr %s1536, 128
          %s1538 = scalar_lea.vmem [#allocation2], %s1537
          %1539 = dma.done %s1535, 2048
        $region60: #{aff_forward.1} parent=55 // pred_fallthru
          _
      $region56: #{aff_forward.1} parent=5 // pred_fallthru
        _
    $region6: #{aff_forward.1} parent=1 // loop_footer
      %s20 = sadd.s32 1, %s16
    $region7: #{aff_forward.1} parent=1 // loop_footer_branch
      %15 = sbr.rel target = $region3
    $region8: #{aff_forward.1} parent=1 // loop_exit
      _
    %1540 = vsyncpa [#allocation3], 1
    %s1541 = scalar_lea.sflag [#allocation3], 1
    %1542 = vsyncpa %s1541, 1

</llo_original>
